<compile_context>
chip_gen: v7x
topology: tpu7x:2x2x1
jax: 0.10.0
libtpu: 0.0.40
codegen_flags: <defaults>
</compile_context>

<pallas_src>
import jax
import jax.numpy as jnp
from jax import lax
from jax.experimental import pallas as pl
from jax.experimental.pallas import tpu as pltpu

EPS = 1e-5

# logical (PyTorch) dims and lane-padded dims
D_IN, D_H1, D_H2, D_OUT = 784, 300, 100, 10
D_IN_P, D_H1_P, D_H2_P, D_OUT_P = 896, 384, 128, 128


# ---------------------------------------------------------------------------
# Fused kernel: fc1 -> ReLU -> BN1 -> fc2 -> ReLU -> BN2 -> fc3,
# whole batch resident in VMEM (single invocation, no grid).
# ---------------------------------------------------------------------------
def _lenet_fused_kernel(x_ref, w1_ref, b1_ref, g1_ref, be1_ref,
                        w2_ref, b2_ref, g2_ref, be2_ref,
                        w3_ref, b3_ref, o_ref):
    x = x_ref[...]                                            # (B, 896) bf16
    inv_b = 1.0 / x.shape[0]                                  # static python float

    def batchnorm(h, gamma, beta):
        # one-pass batch stats (biased variance) folded into scale/shift
        s = jnp.sum(h, axis=0, keepdims=True)
        ss = jnp.sum(h * h, axis=0, keepdims=True)
        mean = s * inv_b
        var = jnp.maximum(ss * inv_b - mean * mean, 0.0)      # guard tiny negatives
        scale = gamma * lax.rsqrt(var + EPS)
        shift = beta - mean * scale
        return h * scale + shift

    # fc1 + ReLU   (MXU: bf16 x bf16 -> f32 accumulate)
    h1 = jnp.dot(x, w1_ref[...],
                 preferred_element_type=jnp.float32) + b1_ref[...]     # (B, 384) f32
    h1 = jnp.maximum(h1, 0.0)

    # BN1
    hn1 = batchnorm(h1, g1_ref[...], be1_ref[...])                     # (B, 384) f32

    # fc2 + ReLU
    h2 = jnp.dot(hn1.astype(jnp.bfloat16), w2_ref[...],
                 preferred_element_type=jnp.float32) + b2_ref[...]     # (B, 128) f32
    h2 = jnp.maximum(h2, 0.0)

    # BN2
    hn2 = batchnorm(h2, g2_ref[...], be2_ref[...])                     # (B, 128) f32

    # fc3
    o_ref[...] = jnp.dot(hn2.astype(jnp.bfloat16), w3_ref[...],
                         preferred_element_type=jnp.float32) + b3_ref[...]  # (B, 128)


# ---------------------------------------------------------------------------
# Wrapper
# ---------------------------------------------------------------------------
def lenet_batch_forward(x, packed):
    """x: (B, 1, 28, 28) float32. packed: lane-padded params. Returns (B, 10) f32."""
    B = x.shape[0]
    # == torch x.view(-1, 784); cast to bf16 here (halves HBM read of the
    # largest streamed array) and lane-pad 784 -> 896 with zeros.
    x2d = x.reshape(B, D_IN).astype(jnp.bfloat16)
    x2d = jnp.pad(x2d, ((0, 0), (0, D_IN_P - D_IN)))

    # VMEM working set: x(bf16) + weights(bf16) + f32 intermediates + margin.
    vmem = int(B * D_IN_P * 2
               + (D_IN_P * D_H1_P + D_H1_P * D_H2_P + D_H2_P * D_OUT_P) * 2
               + B * (3 * D_H1_P + 4 * D_H2_P + D_OUT_P) * 4
               + (4 << 20))                                   # margin
    cost = pl.CostEstimate(
        flops=2 * B * (D_IN_P * D_H1_P + D_H1_P * D_H2_P + D_H2_P * D_OUT_P),
        transcendentals=D_H1_P + D_H2_P,                      # rsqrt per feature
        bytes_accessed=B * D_IN_P * 2
                       + (D_IN_P * D_H1_P + D_H1_P * D_H2_P + D_H2_P * D_OUT_P) * 2
                       + B * D_OUT_P * 4)

    vmem_full = pl.BlockSpec(memory_space=pltpu.MemorySpace.VMEM)
    out_p = pl.pallas_call(
        _lenet_fused_kernel,
        out_shape=jax.ShapeDtypeStruct((B, D_OUT_P), jnp.float32),
        in_specs=[vmem_full] * 11,
        out_specs=vmem_full,
        compiler_params=pltpu.CompilerParams(
            vmem_limit_bytes=min(vmem, 64 << 20)),
        cost_estimate=cost,
    )(x2d,
      packed["w1"], packed["b1"], packed["g1"], packed["be1"],
      packed["w2"], packed["b2"], packed["g2"], packed["be2"],
      packed["w3"], packed["b3"])

    return out_p[:, :D_OUT]                                   # un-pad 128 -> 10


# ---------------------------------------------------------------------------
# Params (logical f32 for reference; packed = lane-padded + bf16 weights)
# ---------------------------------------------------------------------------
def init_params(key):
    """Mimics torch.nn.Linear / BatchNorm1d defaults. Weights stored as (in, out)."""
    dims = [(D_IN, D_H1), (D_H1, D_H2), (D_H2, D_OUT)]
    keys = jax.random.split(key, 6)
    p = {}
    for i, (fan_in, fan_out) in enumerate(dims, start=1):
        bound = 1.0 / float(jnp.sqrt(float(fan_in)))
        p[f"w{i}"] = jax.random.uniform(keys[2 * (i - 1)], (fan_in, fan_out),
                                        jnp.float32, -bound, bound)
        p[f"b{i}"] = jax.random.uniform(keys[2 * (i - 1) + 1], (1, fan_out),
                                        jnp.float32, -bound, bound)
    p["g1"] = jnp.ones((1, D_H1), jnp.float32)
    p["be1"] = jnp.zeros((1, D_H1), jnp.float32)
    p["g2"] = jnp.ones((1, D_H2), jnp.float32)
    p["be2"] = jnp.zeros((1, D_H2), jnp.float32)
    return p


def _pad2(a, shape):
    return jnp.pad(a, ((0, shape[0] - a.shape[0]), (0, shape[1] - a.shape[1])))


def pack_params(p):
    """Zero-pad to lane multiples of 128 and cast matmul weights to bf16."""
    return {
        "w1": _pad2(p["w1"], (D_IN_P, D_H1_P)).astype(jnp.bfloat16),
        "b1": _pad2(p["b1"], (1, D_H1_P)),
        "g1": _pad2(p["g1"], (1, D_H1_P)),      # padded gamma = 0 -> padded cols stay 0
        "be1": _pad2(p["be1"], (1, D_H1_P)),
        "w2": _pad2(p["w2"], (D_H1_P, D_H2_P)).astype(jnp.bfloat16),
        "b2": _pad2(p["b2"], (1, D_H2_P)),
        "g2": _pad2(p["g2"], (1, D_H2_P)),
        "be2": _pad2(p["be2"], (1, D_H2_P)),
        "w3": _pad2(p["w3"], (D_H2_P, D_OUT_P)).astype(jnp.bfloat16),
        "b3": _pad2(p["b3"], (1, D_OUT_P)),
    }


def reference_forward(x, p):
    """Pure-JAX f32 reference matching the PyTorch module's training-mode forward."""
    h = x.reshape(x.shape[0], D_IN) @ p["w1"] + p["b1"]
    h = jnp.maximum(h, 0.0)
    h = (h - h.mean(0, keepdims=True)) * lax.rsqrt(h.var(0, keepdims=True) + EPS) \
        * p["g1"] + p["be1"]
    h = jnp.maximum(h @ p["w2"] + p["b2"], 0.0)
    h = (h - h.mean(0, keepdims=True)) * lax.rsqrt(h.var(0, keepdims=True) + EPS) \
        * p["g2"] + p["be2"]
    return h @ p["w3"] + p["b3"]


if __name__ == "__main__":
    key = jax.random.PRNGKey(0)
    k_x, k_p = jax.random.split(key)

    B = 64  # small demo batch; BatchNorm (training mode) needs B > 1
    x = jax.random.normal(k_x, (B, 1, 28, 28), dtype=jnp.float32)
    params = init_params(k_p)
    packed = pack_params(params)

    fwd = jax.jit(lenet_batch_forward)
    out = fwd(x, packed)
    jax.block_until_ready(out)

    assert out.shape == (B, D_OUT) and out.dtype == jnp.float32
    ref = reference_forward(x, params)
    err = float(jnp.max(jnp.abs(out - ref)))
    assert err < 0.15, f"max abs error vs f32 reference too large: {err}"
    print("KERNEL_OK")
</pallas_src>

<mosaic_0001>
module attributes {stable_mosaic.version = 11 : i64} {
  func.func @_lenet_fused_kernel(%arg0: memref<64x896xbf16, #tpu.memory_space<vmem>>, %arg1: memref<896x384xbf16, #tpu.memory_space<vmem>>, %arg2: memref<1x384xf32, #tpu.memory_space<vmem>>, %arg3: memref<1x384xf32, #tpu.memory_space<vmem>>, %arg4: memref<1x384xf32, #tpu.memory_space<vmem>>, %arg5: memref<384x128xbf16, #tpu.memory_space<vmem>>, %arg6: memref<1x128xf32, #tpu.memory_space<vmem>>, %arg7: memref<1x128xf32, #tpu.memory_space<vmem>>, %arg8: memref<1x128xf32, #tpu.memory_space<vmem>>, %arg9: memref<128x128xbf16, #tpu.memory_space<vmem>>, %arg10: memref<1x128xf32, #tpu.memory_space<vmem>>, %arg11: memref<64x128xf32, #tpu.memory_space<vmem>>) attributes {dimension_semantics = [], scalar_prefetch = 0 : i64, scratch_operands = 0 : i64, tpu.core_type = #tpu.core_type<tc>} {
    %c0 = arith.constant 0 : index
    %c0_0 = arith.constant 0 : index
    %0 = vector.load %arg0[%c0, %c0_0] : memref<64x896xbf16, #tpu.memory_space<vmem>>, vector<64x896xbf16>
    %c0_1 = arith.constant 0 : index
    %c0_2 = arith.constant 0 : index
    %1 = vector.load %arg1[%c0_1, %c0_2] : memref<896x384xbf16, #tpu.memory_space<vmem>>, vector<896x384xbf16>
    %cst = arith.constant dense<0.000000e+00> : vector<64x384xf32>
    %2 = tpu.matmul %0, %1, %cst {dimension_numbers = #tpu.dot_dimension_numbers<[1], [0], [0], [1], [0, 0, 1, 1], [], []>} : vector<64x896xbf16>, vector<896x384xbf16>, vector<64x384xf32> -> vector<64x384xf32>
    %c0_3 = arith.constant 0 : index
    %c0_4 = arith.constant 0 : index
    %3 = vector.load %arg2[%c0_3, %c0_4] : memref<1x384xf32, #tpu.memory_space<vmem>>, vector<1x384xf32>
    %4 = vector.broadcast %3 : vector<1x384xf32> to vector<64x384xf32>
    %5 = arith.addf %2, %4 : vector<64x384xf32>
    %cst_5 = arith.constant 0.000000e+00 : f32
    %6 = vector.broadcast %cst_5 : f32 to vector<64x384xf32>
    %7 = arith.maximumf %5, %6 : vector<64x384xf32>
    %c0_6 = arith.constant 0 : index
    %c0_7 = arith.constant 0 : index
    %8 = vector.load %arg3[%c0_6, %c0_7] : memref<1x384xf32, #tpu.memory_space<vmem>>, vector<1x384xf32>
    %c0_8 = arith.constant 0 : index
    %c0_9 = arith.constant 0 : index
    %9 = vector.load %arg4[%c0_8, %c0_9] : memref<1x384xf32, #tpu.memory_space<vmem>>, vector<1x384xf32>
    %cst_10 = arith.constant dense<0.000000e+00> : vector<384xf32>
    %10 = vector.multi_reduction <add>, %7, %cst_10 [0] : vector<64x384xf32> to vector<384xf32>
    %11 = vector.shape_cast %10 : vector<384xf32> to vector<1x384xf32>
    %12 = arith.mulf %7, %7 : vector<64x384xf32>
    %cst_11 = arith.constant dense<0.000000e+00> : vector<384xf32>
    %13 = vector.multi_reduction <add>, %12, %cst_11 [0] : vector<64x384xf32> to vector<384xf32>
    %14 = vector.shape_cast %13 : vector<384xf32> to vector<1x384xf32>
    %cst_12 = arith.constant 1.562500e-02 : f32
    %15 = vector.broadcast %cst_12 : f32 to vector<1x384xf32>
    %16 = arith.mulf %11, %15 : vector<1x384xf32>
    %cst_13 = arith.constant 1.562500e-02 : f32
    %17 = vector.broadcast %cst_13 : f32 to vector<1x384xf32>
    %18 = arith.mulf %14, %17 : vector<1x384xf32>
    %19 = arith.mulf %16, %16 : vector<1x384xf32>
    %20 = arith.subf %18, %19 : vector<1x384xf32>
    %cst_14 = arith.constant 0.000000e+00 : f32
    %21 = vector.broadcast %cst_14 : f32 to vector<1x384xf32>
    %22 = arith.maximumf %20, %21 : vector<1x384xf32>
    %cst_15 = arith.constant 9.99999974E-6 : f32
    %23 = vector.broadcast %cst_15 : f32 to vector<1x384xf32>
    %24 = arith.addf %22, %23 : vector<1x384xf32>
    %25 = math.rsqrt %24 : vector<1x384xf32>
    %26 = arith.mulf %8, %25 : vector<1x384xf32>
    %27 = arith.mulf %16, %26 : vector<1x384xf32>
    %28 = arith.subf %9, %27 : vector<1x384xf32>
    %29 = vector.broadcast %26 : vector<1x384xf32> to vector<64x384xf32>
    %30 = arith.mulf %7, %29 : vector<64x384xf32>
    %31 = vector.broadcast %28 : vector<1x384xf32> to vector<64x384xf32>
    %32 = arith.addf %30, %31 : vector<64x384xf32>
    %33 = arith.truncf %32 : vector<64x384xf32> to vector<64x384xbf16>
    %c0_16 = arith.constant 0 : index
    %c0_17 = arith.constant 0 : index
    %34 = vector.load %arg5[%c0_16, %c0_17] : memref<384x128xbf16, #tpu.memory_space<vmem>>, vector<384x128xbf16>
    %cst_18 = arith.constant dense<0.000000e+00> : vector<64x128xf32>
    %35 = tpu.matmul %33, %34, %cst_18 {dimension_numbers = #tpu.dot_dimension_numbers<[1], [0], [0], [1], [0, 0, 1, 1], [], []>} : vector<64x384xbf16>, vector<384x128xbf16>, vector<64x128xf32> -> vector<64x128xf32>
    %c0_19 = arith.constant 0 : index
    %c0_20 = arith.constant 0 : index
    %36 = vector.load %arg6[%c0_19, %c0_20] : memref<1x128xf32, #tpu.memory_space<vmem>>, vector<1x128xf32>
    %37 = vector.broadcast %36 : vector<1x128xf32> to vector<64x128xf32>
    %38 = arith.addf %35, %37 : vector<64x128xf32>
    %cst_21 = arith.constant 0.000000e+00 : f32
    %39 = vector.broadcast %cst_21 : f32 to vector<64x128xf32>
    %40 = arith.maximumf %38, %39 : vector<64x128xf32>
    %c0_22 = arith.constant 0 : index
    %c0_23 = arith.constant 0 : index
    %41 = vector.load %arg7[%c0_22, %c0_23] : memref<1x128xf32, #tpu.memory_space<vmem>>, vector<1x128xf32>
    %c0_24 = arith.constant 0 : index
    %c0_25 = arith.constant 0 : index
    %42 = vector.load %arg8[%c0_24, %c0_25] : memref<1x128xf32, #tpu.memory_space<vmem>>, vector<1x128xf32>
    %cst_26 = arith.constant dense<0.000000e+00> : vector<128xf32>
    %43 = vector.multi_reduction <add>, %40, %cst_26 [0] : vector<64x128xf32> to vector<128xf32>
    %44 = vector.shape_cast %43 : vector<128xf32> to vector<1x128xf32>
    %45 = arith.mulf %40, %40 : vector<64x128xf32>
    %cst_27 = arith.constant dense<0.000000e+00> : vector<128xf32>
    %46 = vector.multi_reduction <add>, %45, %cst_27 [0] : vector<64x128xf32> to vector<128xf32>
    %47 = vector.shape_cast %46 : vector<128xf32> to vector<1x128xf32>
    %cst_28 = arith.constant 1.562500e-02 : f32
    %48 = vector.broadcast %cst_28 : f32 to vector<1x128xf32>
    %49 = arith.mulf %44, %48 : vector<1x128xf32>
    %cst_29 = arith.constant 1.562500e-02 : f32
    %50 = vector.broadcast %cst_29 : f32 to vector<1x128xf32>
    %51 = arith.mulf %47, %50 : vector<1x128xf32>
    %52 = arith.mulf %49, %49 : vector<1x128xf32>
    %53 = arith.subf %51, %52 : vector<1x128xf32>
    %cst_30 = arith.constant 0.000000e+00 : f32
    %54 = vector.broadcast %cst_30 : f32 to vector<1x128xf32>
    %55 = arith.maximumf %53, %54 : vector<1x128xf32>
    %cst_31 = arith.constant 9.99999974E-6 : f32
    %56 = vector.broadcast %cst_31 : f32 to vector<1x128xf32>
    %57 = arith.addf %55, %56 : vector<1x128xf32>
    %58 = math.rsqrt %57 : vector<1x128xf32>
    %59 = arith.mulf %41, %58 : vector<1x128xf32>
    %60 = arith.mulf %49, %59 : vector<1x128xf32>
    %61 = arith.subf %42, %60 : vector<1x128xf32>
    %62 = vector.broadcast %59 : vector<1x128xf32> to vector<64x128xf32>
    %63 = arith.mulf %40, %62 : vector<64x128xf32>
    %64 = vector.broadcast %61 : vector<1x128xf32> to vector<64x128xf32>
    %65 = arith.addf %63, %64 : vector<64x128xf32>
    %66 = arith.truncf %65 : vector<64x128xf32> to vector<64x128xbf16>
    %c0_32 = arith.constant 0 : index
    %c0_33 = arith.constant 0 : index
    %67 = vector.load %arg9[%c0_32, %c0_33] : memref<128x128xbf16, #tpu.memory_space<vmem>>, vector<128x128xbf16>
    %cst_34 = arith.constant dense<0.000000e+00> : vector<64x128xf32>
    %68 = tpu.matmul %66, %67, %cst_34 {dimension_numbers = #tpu.dot_dimension_numbers<[1], [0], [0], [1], [0, 0, 1, 1], [], []>} : vector<64x128xbf16>, vector<128x128xbf16>, vector<64x128xf32> -> vector<64x128xf32>
    %c0_35 = arith.constant 0 : index
    %c0_36 = arith.constant 0 : index
    %69 = vector.load %arg10[%c0_35, %c0_36] : memref<1x128xf32, #tpu.memory_space<vmem>>, vector<1x128xf32>
    %70 = vector.broadcast %69 : vector<1x128xf32> to vector<64x128xf32>
    %71 = arith.addf %68, %70 : vector<64x128xf32>
    %c0_37 = arith.constant 0 : index
    %c0_38 = arith.constant 0 : index
    %72 = vector.load %arg11[%c0_37, %c0_38] : memref<64x128xf32, #tpu.memory_space<vmem>>, vector<64x128xf32>
    tpu.vector_store %arg11[%c0_37, %c0_38], %71 {strides = array<i32>} : memref<64x128xf32, #tpu.memory_space<vmem>>, vector<64x128xf32>,
    return
  }
}

</mosaic_0001>

<llo_original>
// kernel: lenet_batch_forward.1
$region0: #{lenet_batch_forward.1}
  #allocation0 [shape = 'u32[]', space=smem, size = 0x4, offset = 0x4, fixed_abs, tag = 'smem constant byte address 0x4 - core index']
  #allocation1 [shape = 'u32[144,128]{1,0:T(1,128)}', space=vmem, size = 0x12000, scoped, tag = 'internal scratch']
  %s0 = inlined_call_operand.vmem [shape: bf16[64,896], index: 0, kind: input, shape index: {}]
  %s1 = inlined_call_operand.vmem [shape: bf16[896,384], index: 1, kind: input, shape index: {}]
  %s2 = inlined_call_operand.vmem [shape: f32[1,384], index: 2, kind: input, shape index: {}]
  %s3 = inlined_call_operand.vmem [shape: f32[1,384], index: 3, kind: input, shape index: {}]
  %s4 = inlined_call_operand.vmem [shape: f32[1,384], index: 4, kind: input, shape index: {}]
  %s5 = inlined_call_operand.vmem [shape: bf16[384,128], index: 5, kind: input, shape index: {}]
  %s6 = inlined_call_operand.vmem [shape: f32[1,128], index: 6, kind: input, shape index: {}]
  %s7 = inlined_call_operand.vmem [shape: f32[1,128], index: 7, kind: input, shape index: {}]
  %s8 = inlined_call_operand.vmem [shape: f32[1,128], index: 8, kind: input, shape index: {}]
  %s9 = inlined_call_operand.vmem [shape: bf16[128,128], index: 9, kind: input, shape index: {}]
  %s10 = inlined_call_operand.vmem [shape: f32[1,128], index: 10, kind: input, shape index: {}]
  %s11 = inlined_call_operand.vmem [shape: f32[64,128], index: 11, kind: output, shape index: {}]
  %s12 = sld [smem:[#allocation0]]
  $region54: #{lenet_batch_forward.1} parent=0
    _
  %s14 = ssub.s32 1, %s12
  %s15 = scalar_select 0, %s14, %s12
  // Predicated region
  $region2: #{lenet_batch_forward.1} parent=0 // pred_check
    _
  $region3: #{lenet_batch_forward.1} parent=0 // pred_check_branch
    %17 = sbr.rel (0) target = $region5
  $region4: #{lenet_batch_forward.1} parent=0 // pred_region
    _
  $region5: #{lenet_batch_forward.1} parent=0 // pred_fallthru
    _
  // Predicated region
  $region6: #{lenet_batch_forward.1} parent=0 // pred_check
    _
  $region7: #{lenet_batch_forward.1} parent=0 // pred_check_branch
    %19 = sbr.rel (0) target = $region9
  $region8: #{lenet_batch_forward.1} parent=0 // pred_region
    _
  $region9: #{lenet_batch_forward.1} parent=0 // pred_fallthru
    _
  // Predicated region
  $region10: #{lenet_batch_forward.1} parent=0 // pred_check
    _
  $region11: #{lenet_batch_forward.1} parent=0 // pred_check_branch
    %21 = sbr.rel (0) target = $region13
  $region12: #{lenet_batch_forward.1} parent=0 // pred_region
    _
  $region13: #{lenet_batch_forward.1} parent=0 // pred_fallthru
    _
  // Predicated region
  $region14: #{lenet_batch_forward.1} parent=0 // pred_check
    _
  $region15: #{lenet_batch_forward.1} parent=0 // pred_check_branch
    %23 = sbr.rel (0) target = $region17
  $region16: #{lenet_batch_forward.1} parent=0 // pred_region
    _
  $region17: #{lenet_batch_forward.1} parent=0 // pred_fallthru
    _
  // Predicated region
  $region18: #{lenet_batch_forward.1} parent=0 // pred_check
    _
  $region19: #{lenet_batch_forward.1} parent=0 // pred_check_branch
    %25 = sbr.rel (0) target = $region21
  $region20: #{lenet_batch_forward.1} parent=0 // pred_region
    _
  $region21: #{lenet_batch_forward.1} parent=0 // pred_fallthru
    _
  // Predicated region
  $region22: #{lenet_batch_forward.1} parent=0 // pred_check
    _
  $region23: #{lenet_batch_forward.1} parent=0 // pred_check_branch
    %27 = sbr.rel (0) target = $region25
  $region24: #{lenet_batch_forward.1} parent=0 // pred_region
    _
  $region25: #{lenet_batch_forward.1} parent=0 // pred_fallthru
    _
  // Predicated region
  $region26: #{lenet_batch_forward.1} parent=0 // pred_check
    _
  $region27: #{lenet_batch_forward.1} parent=0 // pred_check_branch
    %29 = sbr.rel (0) target = $region29
  $region28: #{lenet_batch_forward.1} parent=0 // pred_region
    _
  $region29: #{lenet_batch_forward.1} parent=0 // pred_fallthru
    _
  // Predicated region
  $region30: #{lenet_batch_forward.1} parent=0 // pred_check
    _
  $region31: #{lenet_batch_forward.1} parent=0 // pred_check_branch
    %31 = sbr.rel (0) target = $region33
  $region32: #{lenet_batch_forward.1} parent=0 // pred_region
    _
  $region33: #{lenet_batch_forward.1} parent=0 // pred_fallthru
    _
  // Predicated region
  $region34: #{lenet_batch_forward.1} parent=0 // pred_check
    _
  $region35: #{lenet_batch_forward.1} parent=0 // pred_check_branch
    %33 = sbr.rel (0) target = $region37
  $region36: #{lenet_batch_forward.1} parent=0 // pred_region
    _
  $region37: #{lenet_batch_forward.1} parent=0 // pred_fallthru
    _
  // Predicated region
  $region38: #{lenet_batch_forward.1} parent=0 // pred_check
    _
  $region39: #{lenet_batch_forward.1} parent=0 // pred_check_branch
    %35 = sbr.rel (0) target = $region41
  $region40: #{lenet_batch_forward.1} parent=0 // pred_region
    _
  $region41: #{lenet_batch_forward.1} parent=0 // pred_fallthru
    _
  // Predicated region
  $region42: #{lenet_batch_forward.1} parent=0 // pred_check
    _
  $region43: #{lenet_batch_forward.1} parent=0 // pred_check_branch
    %37 = sbr.rel (0) target = $region45
  $region44: #{lenet_batch_forward.1} parent=0 // pred_region
    _
  $region45: #{lenet_batch_forward.1} parent=0 // pred_fallthru
    _
  %v39 = vld [vmem:[%s0] sm:$0xff]
  %v40 = vld [vmem:[%s0 + $0x8] sm:$0xff]
  %v41 = vld [vmem:[%s0 + $0x10] sm:$0xff]
  %v42 = vld [vmem:[%s0 + $0x18] sm:$0xf]
  %v43 = vld [vmem:[%s0 + $0x1c] sm:$0xff]
  %v44 = vld [vmem:[%s0 + $0x24] sm:$0xff]
  %v45 = vld [vmem:[%s0 + $0x2c] sm:$0xff]
  %v46 = vld [vmem:[%s0 + $0x34] sm:$0xf]
  %v47 = vld [vmem:[%s0 + $0x38] sm:$0xff]
  %v48 = vld [vmem:[%s0 + $0x40] sm:$0xff]
  %v49 = vld [vmem:[%s0 + $0x48] sm:$0xff]
  %v50 = vld [vmem:[%s0 + $0x50] sm:$0xf]
  %v51 = vld [vmem:[%s0 + $0x54] sm:$0xff]
  %v52 = vld [vmem:[%s0 + $0x5c] sm:$0xff]
  %v53 = vld [vmem:[%s0 + $0x64] sm:$0xff]
  %v54 = vld [vmem:[%s0 + $0x6c] sm:$0xf]
  %v55 = vld [vmem:[%s0 + $0x70] sm:$0xff]
  %v56 = vld [vmem:[%s0 + $0x78] sm:$0xff]
  %v57 = vld [vmem:[%s0 + $0x80] sm:$0xff]
  %v58 = vld [vmem:[%s0 + $0x88] sm:$0xf]
  %v59 = vld [vmem:[%s0 + $0x8c] sm:$0xff]
  %v60 = vld [vmem:[%s0 + $0x94] sm:$0xff]
  %v61 = vld [vmem:[%s0 + $0x9c] sm:$0xff]
  %v62 = vld [vmem:[%s0 + $0xa4] sm:$0xf]
  %v63 = vld [vmem:[%s0 + $0xa8] sm:$0xff]
  %v64 = vld [vmem:[%s0 + $0xb0] sm:$0xff]
  %v65 = vld [vmem:[%s0 + $0xb8] sm:$0xff]
  %v66 = vld [vmem:[%s0 + $0xc0] sm:$0xf]
  %v67 = vld [vmem:[%s0 + $0xc4] sm:$0xff]
  %v68 = vld [vmem:[%s0 + $0xcc] sm:$0xff]
  %v69 = vld [vmem:[%s0 + $0xd4] sm:$0xff]
  %v70 = vld [vmem:[%s0 + $0xdc] sm:$0xf]
  %v71 = vld [vmem:[%s1] sm:$0xff]
  %v72 = vld [vmem:[%s1 + $0x8] sm:$0xf]
  %v73 = vld [vmem:[%s1 + $0xc] sm:$0xff]
  %v74 = vld [vmem:[%s1 + $0x14] sm:$0xf]
  %v75 = vld [vmem:[%s1 + $0x18] sm:$0xff]
  %v76 = vld [vmem:[%s1 + $0x20] sm:$0xf]
  %v77 = vld [vmem:[%s1 + $0x24] sm:$0xff]
  %v78 = vld [vmem:[%s1 + $0x2c] sm:$0xf]
  %v79 = vld [vmem:[%s1 + $0x30] sm:$0xff]
  %v80 = vld [vmem:[%s1 + $0x38] sm:$0xf]
  %v81 = vld [vmem:[%s1 + $0x3c] sm:$0xff]
  %v82 = vld [vmem:[%s1 + $0x44] sm:$0xf]
  %v83 = vld [vmem:[%s1 + $0x48] sm:$0xff]
  %v84 = vld [vmem:[%s1 + $0x50] sm:$0xf]
  %v85 = vld [vmem:[%s1 + $0x54] sm:$0xff]
  %v86 = vld [vmem:[%s1 + $0x5c] sm:$0xf]
  %v87 = vld [vmem:[%s1 + $0x60] sm:$0xff]
  %v88 = vld [vmem:[%s1 + $0x68] sm:$0xf]
  %v89 = vld [vmem:[%s1 + $0x6c] sm:$0xff]
  %v90 = vld [vmem:[%s1 + $0x74] sm:$0xf]
  %v91 = vld [vmem:[%s1 + $0x78] sm:$0xff]
  %v92 = vld [vmem:[%s1 + $0x80] sm:$0xf]
  %v93 = vld [vmem:[%s1 + $0x84] sm:$0xff]
  %v94 = vld [vmem:[%s1 + $0x8c] sm:$0xf]
  %v95 = vld [vmem:[%s1 + $0x90] sm:$0xff]
  %v96 = vld [vmem:[%s1 + $0x98] sm:$0xf]
  %v97 = vld [vmem:[%s1 + $0x9c] sm:$0xff]
  %v98 = vld [vmem:[%s1 + $0xa4] sm:$0xf]
  %v99 = vld [vmem:[%s1 + $0xa8] sm:$0xff]
  %v100 = vld [vmem:[%s1 + $0xb0] sm:$0xf]
  %v101 = vld [vmem:[%s1 + $0xb4] sm:$0xff]
  %v102 = vld [vmem:[%s1 + $0xbc] sm:$0xf]
  %v103 = vld [vmem:[%s1 + $0xc0] sm:$0xff]
  %v104 = vld [vmem:[%s1 + $0xc8] sm:$0xf]
  %v105 = vld [vmem:[%s1 + $0xcc] sm:$0xff]
  %v106 = vld [vmem:[%s1 + $0xd4] sm:$0xf]
  %v107 = vld [vmem:[%s1 + $0xd8] sm:$0xff]
  %v108 = vld [vmem:[%s1 + $0xe0] sm:$0xf]
  %v109 = vld [vmem:[%s1 + $0xe4] sm:$0xff]
  %v110 = vld [vmem:[%s1 + $0xec] sm:$0xf]
  %v111 = vld [vmem:[%s1 + $0xf0] sm:$0xff]
  %v112 = vld [vmem:[%s1 + $0xf8] sm:$0xf]
  %v113 = vld [vmem:[%s1 + $0xfc] sm:$0xff]
  %v114 = vld [vmem:[%s1 + $0x104] sm:$0xf]
  %v115 = vld [vmem:[%s1 + $0x108] sm:$0xff]
  %v116 = vld [vmem:[%s1 + $0x110] sm:$0xf]
  %v117 = vld [vmem:[%s1 + $0x114] sm:$0xff]
  %v118 = vld [vmem:[%s1 + $0x11c] sm:$0xf]
  %v119 = vld [vmem:[%s1 + $0x120] sm:$0xff]
  %v120 = vld [vmem:[%s1 + $0x128] sm:$0xf]
  %v121 = vld [vmem:[%s1 + $0x12c] sm:$0xff]
  %v122 = vld [vmem:[%s1 + $0x134] sm:$0xf]
  %v123 = vld [vmem:[%s1 + $0x138] sm:$0xff]
  %v124 = vld [vmem:[%s1 + $0x140] sm:$0xf]
  %v125 = vld [vmem:[%s1 + $0x144] sm:$0xff]
  %v126 = vld [vmem:[%s1 + $0x14c] sm:$0xf]
  %v127 = vld [vmem:[%s1 + $0x150] sm:$0xff]
  %v128 = vld [vmem:[%s1 + $0x158] sm:$0xf]
  %v129 = vld [vmem:[%s1 + $0x15c] sm:$0xff]
  %v130 = vld [vmem:[%s1 + $0x164] sm:$0xf]
  %v131 = vld [vmem:[%s1 + $0x168] sm:$0xff]
  %v132 = vld [vmem:[%s1 + $0x170] sm:$0xf]
  %v133 = vld [vmem:[%s1 + $0x174] sm:$0xff]
  %v134 = vld [vmem:[%s1 + $0x17c] sm:$0xf]
  %v135 = vld [vmem:[%s1 + $0x180] sm:$0xff]
  %v136 = vld [vmem:[%s1 + $0x188] sm:$0xf]
  %v137 = vld [vmem:[%s1 + $0x18c] sm:$0xff]
  %v138 = vld [vmem:[%s1 + $0x194] sm:$0xf]
  %v139 = vld [vmem:[%s1 + $0x198] sm:$0xff]
  %v140 = vld [vmem:[%s1 + $0x1a0] sm:$0xf]
  %v141 = vld [vmem:[%s1 + $0x1a4] sm:$0xff]
  %v142 = vld [vmem:[%s1 + $0x1ac] sm:$0xf]
  %v143 = vld [vmem:[%s1 + $0x1b0] sm:$0xff]
  %v144 = vld [vmem:[%s1 + $0x1b8] sm:$0xf]
  %v145 = vld [vmem:[%s1 + $0x1bc] sm:$0xff]
  %v146 = vld [vmem:[%s1 + $0x1c4] sm:$0xf]
  %v147 = vld [vmem:[%s1 + $0x1c8] sm:$0xff]
  %v148 = vld [vmem:[%s1 + $0x1d0] sm:$0xf]
  %v149 = vld [vmem:[%s1 + $0x1d4] sm:$0xff]
  %v150 = vld [vmem:[%s1 + $0x1dc] sm:$0xf]
  %v151 = vld [vmem:[%s1 + $0x1e0] sm:$0xff]
  %v152 = vld [vmem:[%s1 + $0x1e8] sm:$0xf]
  %v153 = vld [vmem:[%s1 + $0x1ec] sm:$0xff]
  %v154 = vld [vmem:[%s1 + $0x1f4] sm:$0xf]
  %v155 = vld [vmem:[%s1 + $0x1f8] sm:$0xff]
  %v156 = vld [vmem:[%s1 + $0x200] sm:$0xf]
  %v157 = vld [vmem:[%s1 + $0x204] sm:$0xff]
  %v158 = vld [vmem:[%s1 + $0x20c] sm:$0xf]
  %v159 = vld [vmem:[%s1 + $0x210] sm:$0xff]
  %v160 = vld [vmem:[%s1 + $0x218] sm:$0xf]
  %v161 = vld [vmem:[%s1 + $0x21c] sm:$0xff]
  %v162 = vld [vmem:[%s1 + $0x224] sm:$0xf]
  %v163 = vld [vmem:[%s1 + $0x228] sm:$0xff]
  %v164 = vld [vmem:[%s1 + $0x230] sm:$0xf]
  %v165 = vld [vmem:[%s1 + $0x234] sm:$0xff]
  %v166 = vld [vmem:[%s1 + $0x23c] sm:$0xf]
  %v167 = vld [vmem:[%s1 + $0x240] sm:$0xff]
  %v168 = vld [vmem:[%s1 + $0x248] sm:$0xf]
  %v169 = vld [vmem:[%s1 + $0x24c] sm:$0xff]
  %v170 = vld [vmem:[%s1 + $0x254] sm:$0xf]
  %v171 = vld [vmem:[%s1 + $0x258] sm:$0xff]
  %v172 = vld [vmem:[%s1 + $0x260] sm:$0xf]
  %v173 = vld [vmem:[%s1 + $0x264] sm:$0xff]
  %v174 = vld [vmem:[%s1 + $0x26c] sm:$0xf]
  %v175 = vld [vmem:[%s1 + $0x270] sm:$0xff]
  %v176 = vld [vmem:[%s1 + $0x278] sm:$0xf]
  %v177 = vld [vmem:[%s1 + $0x27c] sm:$0xff]
  %v178 = vld [vmem:[%s1 + $0x284] sm:$0xf]
  %v179 = vld [vmem:[%s1 + $0x288] sm:$0xff]
  %v180 = vld [vmem:[%s1 + $0x290] sm:$0xf]
  %v181 = vld [vmem:[%s1 + $0x294] sm:$0xff]
  %v182 = vld [vmem:[%s1 + $0x29c] sm:$0xf]
  %v183 = vld [vmem:[%s1 + $0x2a0] sm:$0xff]
  %v184 = vld [vmem:[%s1 + $0x2a8] sm:$0xf]
  %v185 = vld [vmem:[%s1 + $0x2ac] sm:$0xff]
  %v186 = vld [vmem:[%s1 + $0x2b4] sm:$0xf]
  %v187 = vld [vmem:[%s1 + $0x2b8] sm:$0xff]
  %v188 = vld [vmem:[%s1 + $0x2c0] sm:$0xf]
  %v189 = vld [vmem:[%s1 + $0x2c4] sm:$0xff]
  %v190 = vld [vmem:[%s1 + $0x2cc] sm:$0xf]
  %v191 = vld [vmem:[%s1 + $0x2d0] sm:$0xff]
  %v192 = vld [vmem:[%s1 + $0x2d8] sm:$0xf]
  %v193 = vld [vmem:[%s1 + $0x2dc] sm:$0xff]
  %v194 = vld [vmem:[%s1 + $0x2e4] sm:$0xf]
  %v195 = vld [vmem:[%s1 + $0x2e8] sm:$0xff]
  %v196 = vld [vmem:[%s1 + $0x2f0] sm:$0xf]
  %v197 = vld [vmem:[%s1 + $0x2f4] sm:$0xff]
  %v198 = vld [vmem:[%s1 + $0x2fc] sm:$0xf]
  %v199 = vld [vmem:[%s1 + $0x300] sm:$0xff]
  %v200 = vld [vmem:[%s1 + $0x308] sm:$0xf]
  %v201 = vld [vmem:[%s1 + $0x30c] sm:$0xff]
  %v202 = vld [vmem:[%s1 + $0x314] sm:$0xf]
  %v203 = vld [vmem:[%s1 + $0x318] sm:$0xff]
  %v204 = vld [vmem:[%s1 + $0x320] sm:$0xf]
  %v205 = vld [vmem:[%s1 + $0x324] sm:$0xff]
  %v206 = vld [vmem:[%s1 + $0x32c] sm:$0xf]
  %v207 = vld [vmem:[%s1 + $0x330] sm:$0xff]
  %v208 = vld [vmem:[%s1 + $0x338] sm:$0xf]
  %v209 = vld [vmem:[%s1 + $0x33c] sm:$0xff]
  %v210 = vld [vmem:[%s1 + $0x344] sm:$0xf]
  %v211 = vld [vmem:[%s1 + $0x348] sm:$0xff]
  %v212 = vld [vmem:[%s1 + $0x350] sm:$0xf]
  %v213 = vld [vmem:[%s1 + $0x354] sm:$0xff]
  %v214 = vld [vmem:[%s1 + $0x35c] sm:$0xf]
  %v215 = vld [vmem:[%s1 + $0x360] sm:$0xff]
  %v216 = vld [vmem:[%s1 + $0x368] sm:$0xf]
  %v217 = vld [vmem:[%s1 + $0x36c] sm:$0xff]
  %v218 = vld [vmem:[%s1 + $0x374] sm:$0xf]
  %v219 = vld [vmem:[%s1 + $0x378] sm:$0xff]
  %v220 = vld [vmem:[%s1 + $0x380] sm:$0xf]
  %v221 = vld [vmem:[%s1 + $0x384] sm:$0xff]
  %v222 = vld [vmem:[%s1 + $0x38c] sm:$0xf]
  %v223 = vld [vmem:[%s1 + $0x390] sm:$0xff]
  %v224 = vld [vmem:[%s1 + $0x398] sm:$0xf]
  %v225 = vld [vmem:[%s1 + $0x39c] sm:$0xff]
  %v226 = vld [vmem:[%s1 + $0x3a4] sm:$0xf]
  %v227 = vld [vmem:[%s1 + $0x3a8] sm:$0xff]
  %v228 = vld [vmem:[%s1 + $0x3b0] sm:$0xf]
  %v229 = vld [vmem:[%s1 + $0x3b4] sm:$0xff]
  %v230 = vld [vmem:[%s1 + $0x3bc] sm:$0xf]
  %v231 = vld [vmem:[%s1 + $0x3c0] sm:$0xff]
  %v232 = vld [vmem:[%s1 + $0x3c8] sm:$0xf]
  %v233 = vld [vmem:[%s1 + $0x3cc] sm:$0xff]
  %v234 = vld [vmem:[%s1 + $0x3d4] sm:$0xf]
  %v235 = vld [vmem:[%s1 + $0x3d8] sm:$0xff]
  %v236 = vld [vmem:[%s1 + $0x3e0] sm:$0xf]
  %v237 = vld [vmem:[%s1 + $0x3e4] sm:$0xff]
  %v238 = vld [vmem:[%s1 + $0x3ec] sm:$0xf]
  %v239 = vld [vmem:[%s1 + $0x3f0] sm:$0xff]
  %v240 = vld [vmem:[%s1 + $0x3f8] sm:$0xf]
  %v241 = vld [vmem:[%s1 + $0x3fc] sm:$0xff]
  %v242 = vld [vmem:[%s1 + $0x404] sm:$0xf]
  %v243 = vld [vmem:[%s1 + $0x408] sm:$0xff]
  %v244 = vld [vmem:[%s1 + $0x410] sm:$0xf]
  %v245 = vld [vmem:[%s1 + $0x414] sm:$0xff]
  %v246 = vld [vmem:[%s1 + $0x41c] sm:$0xf]
  %v247 = vld [vmem:[%s1 + $0x420] sm:$0xff]
  %v248 = vld [vmem:[%s1 + $0x428] sm:$0xf]
  %v249 = vld [vmem:[%s1 + $0x42c] sm:$0xff]
  %v250 = vld [vmem:[%s1 + $0x434] sm:$0xf]
  %v251 = vld [vmem:[%s1 + $0x438] sm:$0xff]
  %v252 = vld [vmem:[%s1 + $0x440] sm:$0xf]
  %v253 = vld [vmem:[%s1 + $0x444] sm:$0xff]
  %v254 = vld [vmem:[%s1 + $0x44c] sm:$0xf]
  %v255 = vld [vmem:[%s1 + $0x450] sm:$0xff]
  %v256 = vld [vmem:[%s1 + $0x458] sm:$0xf]
  %v257 = vld [vmem:[%s1 + $0x45c] sm:$0xff]
  %v258 = vld [vmem:[%s1 + $0x464] sm:$0xf]
  %v259 = vld [vmem:[%s1 + $0x468] sm:$0xff]
  %v260 = vld [vmem:[%s1 + $0x470] sm:$0xf]
  %v261 = vld [vmem:[%s1 + $0x474] sm:$0xff]
  %v262 = vld [vmem:[%s1 + $0x47c] sm:$0xf]
  %v263 = vld [vmem:[%s1 + $0x480] sm:$0xff]
  %v264 = vld [vmem:[%s1 + $0x488] sm:$0xf]
  %v265 = vld [vmem:[%s1 + $0x48c] sm:$0xff]
  %v266 = vld [vmem:[%s1 + $0x494] sm:$0xf]
  %v267 = vld [vmem:[%s1 + $0x498] sm:$0xff]
  %v268 = vld [vmem:[%s1 + $0x4a0] sm:$0xf]
  %v269 = vld [vmem:[%s1 + $0x4a4] sm:$0xff]
  %v270 = vld [vmem:[%s1 + $0x4ac] sm:$0xf]
  %v271 = vld [vmem:[%s1 + $0x4b0] sm:$0xff]
  %v272 = vld [vmem:[%s1 + $0x4b8] sm:$0xf]
  %v273 = vld [vmem:[%s1 + $0x4bc] sm:$0xff]
  %v274 = vld [vmem:[%s1 + $0x4c4] sm:$0xf]
  %v275 = vld [vmem:[%s1 + $0x4c8] sm:$0xff]
  %v276 = vld [vmem:[%s1 + $0x4d0] sm:$0xf]
  %v277 = vld [vmem:[%s1 + $0x4d4] sm:$0xff]
  %v278 = vld [vmem:[%s1 + $0x4dc] sm:$0xf]
  %v279 = vld [vmem:[%s1 + $0x4e0] sm:$0xff]
  %v280 = vld [vmem:[%s1 + $0x4e8] sm:$0xf]
  %v281 = vld [vmem:[%s1 + $0x4ec] sm:$0xff]
  %v282 = vld [vmem:[%s1 + $0x4f4] sm:$0xf]
  %v283 = vld [vmem:[%s1 + $0x4f8] sm:$0xff]
  %v284 = vld [vmem:[%s1 + $0x500] sm:$0xf]
  %v285 = vld [vmem:[%s1 + $0x504] sm:$0xff]
  %v286 = vld [vmem:[%s1 + $0x50c] sm:$0xf]
  %v287 = vld [vmem:[%s1 + $0x510] sm:$0xff]
  %v288 = vld [vmem:[%s1 + $0x518] sm:$0xf]
  %v289 = vld [vmem:[%s1 + $0x51c] sm:$0xff]
  %v290 = vld [vmem:[%s1 + $0x524] sm:$0xf]
  %v291 = vld [vmem:[%s1 + $0x528] sm:$0xff]
  %v292 = vld [vmem:[%s1 + $0x530] sm:$0xf]
  %v293 = vld [vmem:[%s1 + $0x534] sm:$0xff]
  %v294 = vld [vmem:[%s1 + $0x53c] sm:$0xf]
  %v295 = vld [vmem:[%s2] sm:$0x7]
  %v297 = vlaneseq
  %v298 = vshrl.u32 %v297, 7
  %v299 = vsub.s32 0, %v298
  %v300 = vrot.slane %v295, %v299
  %v301 = vlaneseq
  %v302 = vshrl.u32 %v301, 7
  %v303 = vsub.s32 1, %v302
  %v304 = vrot.slane %v295, %v303
  %v305 = vlaneseq
  %v306 = vshrl.u32 %v305, 7
  %v307 = vsub.s32 2, %v306
  %v308 = vrot.slane %v295, %v307
  %v344 = vunpack.c.l.b16 %v39
  %v345 = vunpack.c.h.b16 %v39
  %v346 = vunpack.c.l.b16 %v40
  %v347 = vunpack.c.h.b16 %v40
  %v348 = vunpack.c.l.b16 %v41
  %v349 = vunpack.c.h.b16 %v41
  %v350 = vunpack.c.l.b16 %v42
  %v351 = vunpack.c.l.b16 %v43
  %v352 = vunpack.c.h.b16 %v43
  %v353 = vunpack.c.l.b16 %v44
  %v354 = vunpack.c.h.b16 %v44
  %v355 = vunpack.c.l.b16 %v45
  %v356 = vunpack.c.h.b16 %v45
  %v357 = vunpack.c.l.b16 %v46
  %v358 = vunpack.c.l.b16 %v47
  %v359 = vunpack.c.h.b16 %v47
  %v360 = vunpack.c.l.b16 %v48
  %v361 = vunpack.c.h.b16 %v48
  %v362 = vunpack.c.l.b16 %v49
  %v363 = vunpack.c.h.b16 %v49
  %v364 = vunpack.c.l.b16 %v50
  %v365 = vunpack.c.l.b16 %v51
  %v366 = vunpack.c.h.b16 %v51
  %v367 = vunpack.c.l.b16 %v52
  %v368 = vunpack.c.h.b16 %v52
  %v369 = vunpack.c.l.b16 %v53
  %v370 = vunpack.c.h.b16 %v53
  %v371 = vunpack.c.l.b16 %v54
  %v372 = vunpack.c.l.b16 %v55
  %v373 = vunpack.c.h.b16 %v55
  %v374 = vunpack.c.l.b16 %v56
  %v375 = vunpack.c.h.b16 %v56
  %v376 = vunpack.c.l.b16 %v57
  %v377 = vunpack.c.h.b16 %v57
  %v378 = vunpack.c.l.b16 %v58
  %v379 = vunpack.c.l.b16 %v59
  %v380 = vunpack.c.h.b16 %v59
  %v381 = vunpack.c.l.b16 %v60
  %v382 = vunpack.c.h.b16 %v60
  %v383 = vunpack.c.l.b16 %v61
  %v384 = vunpack.c.h.b16 %v61
  %v385 = vunpack.c.l.b16 %v62
  %v386 = vunpack.c.l.b16 %v63
  %v387 = vunpack.c.h.b16 %v63
  %v388 = vunpack.c.l.b16 %v64
  %v389 = vunpack.c.h.b16 %v64
  %v390 = vunpack.c.l.b16 %v65
  %v391 = vunpack.c.h.b16 %v65
  %v392 = vunpack.c.l.b16 %v66
  %v393 = vunpack.c.l.b16 %v67
  %v394 = vunpack.c.h.b16 %v67
  %v395 = vunpack.c.l.b16 %v68
  %v396 = vunpack.c.h.b16 %v68
  %v397 = vunpack.c.l.b16 %v69
  %v398 = vunpack.c.h.b16 %v69
  %v399 = vunpack.c.l.b16 %v70
  %v400 = vpack.c.b16 %v351, %v344
  %v401 = vpack.c.b16 %v352, %v345
  %v402 = vpack.c.b16 %v353, %v346
  %v403 = vpack.c.b16 %v354, %v347
  %v404 = vpack.c.b16 %v355, %v348
  %v405 = vpack.c.b16 %v356, %v349
  %v406 = vpack.c.b16 %v357, %v350
  %v407 = vpack.c.b16 %v365, %v358
  %v408 = vpack.c.b16 %v366, %v359
  %v409 = vpack.c.b16 %v367, %v360
  %v410 = vpack.c.b16 %v368, %v361
  %v411 = vpack.c.b16 %v369, %v362
  %v412 = vpack.c.b16 %v370, %v363
  %v413 = vpack.c.b16 %v371, %v364
  %v414 = vpack.c.b16 %v379, %v372
  %v415 = vpack.c.b16 %v380, %v373
  %v416 = vpack.c.b16 %v381, %v374
  %v417 = vpack.c.b16 %v382, %v375
  %v418 = vpack.c.b16 %v383, %v376
  %v419 = vpack.c.b16 %v384, %v377
  %v420 = vpack.c.b16 %v385, %v378
  %v421 = vpack.c.b16 %v393, %v386
  %v422 = vpack.c.b16 %v394, %v387
  %v423 = vpack.c.b16 %v395, %v388
  %v424 = vpack.c.b16 %v396, %v389
  %v425 = vpack.c.b16 %v397, %v390
  %v426 = vpack.c.b16 %v398, %v391
  %v427 = vpack.c.b16 %v399, %v392
  %v680 = vunpack.c.l.b16 %v71
  %v681 = vunpack.c.h.b16 %v71
  %v682 = vunpack.c.l.b16 %v72
  %v683 = vunpack.c.l.b16 %v73
  %v684 = vunpack.c.h.b16 %v73
  %v685 = vunpack.c.l.b16 %v74
  %v686 = vunpack.c.l.b16 %v75
  %v687 = vunpack.c.h.b16 %v75
  %v688 = vunpack.c.l.b16 %v76
  %v689 = vunpack.c.l.b16 %v77
  %v690 = vunpack.c.h.b16 %v77
  %v691 = vunpack.c.l.b16 %v78
  %v692 = vunpack.c.l.b16 %v79
  %v693 = vunpack.c.h.b16 %v79
  %v694 = vunpack.c.l.b16 %v80
  %v695 = vunpack.c.l.b16 %v81
  %v696 = vunpack.c.h.b16 %v81
  %v697 = vunpack.c.l.b16 %v82
  %v698 = vunpack.c.l.b16 %v83
  %v699 = vunpack.c.h.b16 %v83
  %v700 = vunpack.c.l.b16 %v84
  %v701 = vunpack.c.l.b16 %v85
  %v702 = vunpack.c.h.b16 %v85
  %v703 = vunpack.c.l.b16 %v86
  %v704 = vunpack.c.l.b16 %v87
  %v705 = vunpack.c.h.b16 %v87
  %v706 = vunpack.c.l.b16 %v88
  %v707 = vunpack.c.l.b16 %v89
  %v708 = vunpack.c.h.b16 %v89
  %v709 = vunpack.c.l.b16 %v90
  %v710 = vunpack.c.l.b16 %v91
  %v711 = vunpack.c.h.b16 %v91
  %v712 = vunpack.c.l.b16 %v92
  %v713 = vunpack.c.l.b16 %v93
  %v714 = vunpack.c.h.b16 %v93
  %v715 = vunpack.c.l.b16 %v94
  %v716 = vunpack.c.l.b16 %v95
  %v717 = vunpack.c.h.b16 %v95
  %v718 = vunpack.c.l.b16 %v96
  %v719 = vunpack.c.l.b16 %v97
  %v720 = vunpack.c.h.b16 %v97
  %v721 = vunpack.c.l.b16 %v98
  %v722 = vunpack.c.l.b16 %v99
  %v723 = vunpack.c.h.b16 %v99
  %v724 = vunpack.c.l.b16 %v100
  %v725 = vunpack.c.l.b16 %v101
  %v726 = vunpack.c.h.b16 %v101
  %v727 = vunpack.c.l.b16 %v102
  %v728 = vunpack.c.l.b16 %v103
  %v729 = vunpack.c.h.b16 %v103
  %v730 = vunpack.c.l.b16 %v104
  %v731 = vunpack.c.l.b16 %v105
  %v732 = vunpack.c.h.b16 %v105
  %v733 = vunpack.c.l.b16 %v106
  %v734 = vunpack.c.l.b16 %v107
  %v735 = vunpack.c.h.b16 %v107
  %v736 = vunpack.c.l.b16 %v108
  %v737 = vunpack.c.l.b16 %v109
  %v738 = vunpack.c.h.b16 %v109
  %v739 = vunpack.c.l.b16 %v110
  %v740 = vunpack.c.l.b16 %v111
  %v741 = vunpack.c.h.b16 %v111
  %v742 = vunpack.c.l.b16 %v112
  %v743 = vunpack.c.l.b16 %v113
  %v744 = vunpack.c.h.b16 %v113
  %v745 = vunpack.c.l.b16 %v114
  %v746 = vunpack.c.l.b16 %v115
  %v747 = vunpack.c.h.b16 %v115
  %v748 = vunpack.c.l.b16 %v116
  %v749 = vunpack.c.l.b16 %v117
  %v750 = vunpack.c.h.b16 %v117
  %v751 = vunpack.c.l.b16 %v118
  %v752 = vunpack.c.l.b16 %v119
  %v753 = vunpack.c.h.b16 %v119
  %v754 = vunpack.c.l.b16 %v120
  %v755 = vunpack.c.l.b16 %v121
  %v756 = vunpack.c.h.b16 %v121
  %v757 = vunpack.c.l.b16 %v122
  %v758 = vunpack.c.l.b16 %v123
  %v759 = vunpack.c.h.b16 %v123
  %v760 = vunpack.c.l.b16 %v124
  %v761 = vunpack.c.l.b16 %v125
  %v762 = vunpack.c.h.b16 %v125
  %v763 = vunpack.c.l.b16 %v126
  %v764 = vunpack.c.l.b16 %v127
  %v765 = vunpack.c.h.b16 %v127
  %v766 = vunpack.c.l.b16 %v128
  %v767 = vunpack.c.l.b16 %v129
  %v768 = vunpack.c.h.b16 %v129
  %v769 = vunpack.c.l.b16 %v130
  %v770 = vunpack.c.l.b16 %v131
  %v771 = vunpack.c.h.b16 %v131
  %v772 = vunpack.c.l.b16 %v132
  %v773 = vunpack.c.l.b16 %v133
  %v774 = vunpack.c.h.b16 %v133
  %v775 = vunpack.c.l.b16 %v134
  %v776 = vunpack.c.l.b16 %v135
  %v777 = vunpack.c.h.b16 %v135
  %v778 = vunpack.c.l.b16 %v136
  %v779 = vunpack.c.l.b16 %v137
  %v780 = vunpack.c.h.b16 %v137
  %v781 = vunpack.c.l.b16 %v138
  %v782 = vunpack.c.l.b16 %v139
  %v783 = vunpack.c.h.b16 %v139
  %v784 = vunpack.c.l.b16 %v140
  %v785 = vunpack.c.l.b16 %v141
  %v786 = vunpack.c.h.b16 %v141
  %v787 = vunpack.c.l.b16 %v142
  %v788 = vunpack.c.l.b16 %v143
  %v789 = vunpack.c.h.b16 %v143
  %v790 = vunpack.c.l.b16 %v144
  %v791 = vunpack.c.l.b16 %v145
  %v792 = vunpack.c.h.b16 %v145
  %v793 = vunpack.c.l.b16 %v146
  %v794 = vunpack.c.l.b16 %v147
  %v795 = vunpack.c.h.b16 %v147
  %v796 = vunpack.c.l.b16 %v148
  %v797 = vunpack.c.l.b16 %v149
  %v798 = vunpack.c.h.b16 %v149
  %v799 = vunpack.c.l.b16 %v150
  %v800 = vunpack.c.l.b16 %v151
  %v801 = vunpack.c.h.b16 %v151
  %v802 = vunpack.c.l.b16 %v152
  %v803 = vunpack.c.l.b16 %v153
  %v804 = vunpack.c.h.b16 %v153
  %v805 = vunpack.c.l.b16 %v154
  %v806 = vunpack.c.l.b16 %v155
  %v807 = vunpack.c.h.b16 %v155
  %v808 = vunpack.c.l.b16 %v156
  %v809 = vunpack.c.l.b16 %v157
  %v810 = vunpack.c.h.b16 %v157
  %v811 = vunpack.c.l.b16 %v158
  %v812 = vunpack.c.l.b16 %v159
  %v813 = vunpack.c.h.b16 %v159
  %v814 = vunpack.c.l.b16 %v160
  %v815 = vunpack.c.l.b16 %v161
  %v816 = vunpack.c.h.b16 %v161
  %v817 = vunpack.c.l.b16 %v162
  %v818 = vunpack.c.l.b16 %v163
  %v819 = vunpack.c.h.b16 %v163
  %v820 = vunpack.c.l.b16 %v164
  %v821 = vunpack.c.l.b16 %v165
  %v822 = vunpack.c.h.b16 %v165
  %v823 = vunpack.c.l.b16 %v166
  %v824 = vunpack.c.l.b16 %v167
  %v825 = vunpack.c.h.b16 %v167
  %v826 = vunpack.c.l.b16 %v168
  %v827 = vunpack.c.l.b16 %v169
  %v828 = vunpack.c.h.b16 %v169
  %v829 = vunpack.c.l.b16 %v170
  %v830 = vunpack.c.l.b16 %v171
  %v831 = vunpack.c.h.b16 %v171
  %v832 = vunpack.c.l.b16 %v172
  %v833 = vunpack.c.l.b16 %v173
  %v834 = vunpack.c.h.b16 %v173
  %v835 = vunpack.c.l.b16 %v174
  %v836 = vunpack.c.l.b16 %v175
  %v837 = vunpack.c.h.b16 %v175
  %v838 = vunpack.c.l.b16 %v176
  %v839 = vunpack.c.l.b16 %v177
  %v840 = vunpack.c.h.b16 %v177
  %v841 = vunpack.c.l.b16 %v178
  %v842 = vunpack.c.l.b16 %v179
  %v843 = vunpack.c.h.b16 %v179
  %v844 = vunpack.c.l.b16 %v180
  %v845 = vunpack.c.l.b16 %v181
  %v846 = vunpack.c.h.b16 %v181
  %v847 = vunpack.c.l.b16 %v182
  %v848 = vunpack.c.l.b16 %v183
  %v849 = vunpack.c.h.b16 %v183
  %v850 = vunpack.c.l.b16 %v184
  %v851 = vunpack.c.l.b16 %v185
  %v852 = vunpack.c.h.b16 %v185
  %v853 = vunpack.c.l.b16 %v186
  %v854 = vunpack.c.l.b16 %v187
  %v855 = vunpack.c.h.b16 %v187
  %v856 = vunpack.c.l.b16 %v188
  %v857 = vunpack.c.l.b16 %v189
  %v858 = vunpack.c.h.b16 %v189
  %v859 = vunpack.c.l.b16 %v190
  %v860 = vunpack.c.l.b16 %v191
  %v861 = vunpack.c.h.b16 %v191
  %v862 = vunpack.c.l.b16 %v192
  %v863 = vunpack.c.l.b16 %v193
  %v864 = vunpack.c.h.b16 %v193
  %v865 = vunpack.c.l.b16 %v194
  %v866 = vunpack.c.l.b16 %v195
  %v867 = vunpack.c.h.b16 %v195
  %v868 = vunpack.c.l.b16 %v196
  %v869 = vunpack.c.l.b16 %v197
  %v870 = vunpack.c.h.b16 %v197
  %v871 = vunpack.c.l.b16 %v198
  %v872 = vunpack.c.l.b16 %v199
  %v873 = vunpack.c.h.b16 %v199
  %v874 = vunpack.c.l.b16 %v200
  %v875 = vunpack.c.l.b16 %v201
  %v876 = vunpack.c.h.b16 %v201
  %v877 = vunpack.c.l.b16 %v202
  %v878 = vunpack.c.l.b16 %v203
  %v879 = vunpack.c.h.b16 %v203
  %v880 = vunpack.c.l.b16 %v204
  %v881 = vunpack.c.l.b16 %v205
  %v882 = vunpack.c.h.b16 %v205
  %v883 = vunpack.c.l.b16 %v206
  %v884 = vunpack.c.l.b16 %v207
  %v885 = vunpack.c.h.b16 %v207
  %v886 = vunpack.c.l.b16 %v208
  %v887 = vunpack.c.l.b16 %v209
  %v888 = vunpack.c.h.b16 %v209
  %v889 = vunpack.c.l.b16 %v210
  %v890 = vunpack.c.l.b16 %v211
  %v891 = vunpack.c.h.b16 %v211
  %v892 = vunpack.c.l.b16 %v212
  %v893 = vunpack.c.l.b16 %v213
  %v894 = vunpack.c.h.b16 %v213
  %v895 = vunpack.c.l.b16 %v214
  %v896 = vunpack.c.l.b16 %v215
  %v897 = vunpack.c.h.b16 %v215
  %v898 = vunpack.c.l.b16 %v216
  %v899 = vunpack.c.l.b16 %v217
  %v900 = vunpack.c.h.b16 %v217
  %v901 = vunpack.c.l.b16 %v218
  %v902 = vunpack.c.l.b16 %v219
  %v903 = vunpack.c.h.b16 %v219
  %v904 = vunpack.c.l.b16 %v220
  %v905 = vunpack.c.l.b16 %v221
  %v906 = vunpack.c.h.b16 %v221
  %v907 = vunpack.c.l.b16 %v222
  %v908 = vunpack.c.l.b16 %v223
  %v909 = vunpack.c.h.b16 %v223
  %v910 = vunpack.c.l.b16 %v224
  %v911 = vunpack.c.l.b16 %v225
  %v912 = vunpack.c.h.b16 %v225
  %v913 = vunpack.c.l.b16 %v226
  %v914 = vunpack.c.l.b16 %v227
  %v915 = vunpack.c.h.b16 %v227
  %v916 = vunpack.c.l.b16 %v228
  %v917 = vunpack.c.l.b16 %v229
  %v918 = vunpack.c.h.b16 %v229
  %v919 = vunpack.c.l.b16 %v230
  %v920 = vunpack.c.l.b16 %v231
  %v921 = vunpack.c.h.b16 %v231
  %v922 = vunpack.c.l.b16 %v232
  %v923 = vunpack.c.l.b16 %v233
  %v924 = vunpack.c.h.b16 %v233
  %v925 = vunpack.c.l.b16 %v234
  %v926 = vunpack.c.l.b16 %v235
  %v927 = vunpack.c.h.b16 %v235
  %v928 = vunpack.c.l.b16 %v236
  %v929 = vunpack.c.l.b16 %v237
  %v930 = vunpack.c.h.b16 %v237
  %v931 = vunpack.c.l.b16 %v238
  %v932 = vunpack.c.l.b16 %v239
  %v933 = vunpack.c.h.b16 %v239
  %v934 = vunpack.c.l.b16 %v240
  %v935 = vunpack.c.l.b16 %v241
  %v936 = vunpack.c.h.b16 %v241
  %v937 = vunpack.c.l.b16 %v242
  %v938 = vunpack.c.l.b16 %v243
  %v939 = vunpack.c.h.b16 %v243
  %v940 = vunpack.c.l.b16 %v244
  %v941 = vunpack.c.l.b16 %v245
  %v942 = vunpack.c.h.b16 %v245
  %v943 = vunpack.c.l.b16 %v246
  %v944 = vunpack.c.l.b16 %v247
  %v945 = vunpack.c.h.b16 %v247
  %v946 = vunpack.c.l.b16 %v248
  %v947 = vunpack.c.l.b16 %v249
  %v948 = vunpack.c.h.b16 %v249
  %v949 = vunpack.c.l.b16 %v250
  %v950 = vunpack.c.l.b16 %v251
  %v951 = vunpack.c.h.b16 %v251
  %v952 = vunpack.c.l.b16 %v252
  %v953 = vunpack.c.l.b16 %v253
  %v954 = vunpack.c.h.b16 %v253
  %v955 = vunpack.c.l.b16 %v254
  %v956 = vunpack.c.l.b16 %v255
  %v957 = vunpack.c.h.b16 %v255
  %v958 = vunpack.c.l.b16 %v256
  %v959 = vunpack.c.l.b16 %v257
  %v960 = vunpack.c.h.b16 %v257
  %v961 = vunpack.c.l.b16 %v258
  %v962 = vunpack.c.l.b16 %v259
  %v963 = vunpack.c.h.b16 %v259
  %v964 = vunpack.c.l.b16 %v260
  %v965 = vunpack.c.l.b16 %v261
  %v966 = vunpack.c.h.b16 %v261
  %v967 = vunpack.c.l.b16 %v262
  %v968 = vunpack.c.l.b16 %v263
  %v969 = vunpack.c.h.b16 %v263
  %v970 = vunpack.c.l.b16 %v264
  %v971 = vunpack.c.l.b16 %v265
  %v972 = vunpack.c.h.b16 %v265
  %v973 = vunpack.c.l.b16 %v266
  %v974 = vunpack.c.l.b16 %v267
  %v975 = vunpack.c.h.b16 %v267
  %v976 = vunpack.c.l.b16 %v268
  %v977 = vunpack.c.l.b16 %v269
  %v978 = vunpack.c.h.b16 %v269
  %v979 = vunpack.c.l.b16 %v270
  %v980 = vunpack.c.l.b16 %v271
  %v981 = vunpack.c.h.b16 %v271
  %v982 = vunpack.c.l.b16 %v272
  %v983 = vunpack.c.l.b16 %v273
  %v984 = vunpack.c.h.b16 %v273
  %v985 = vunpack.c.l.b16 %v274
  %v986 = vunpack.c.l.b16 %v275
  %v987 = vunpack.c.h.b16 %v275
  %v988 = vunpack.c.l.b16 %v276
  %v989 = vunpack.c.l.b16 %v277
  %v990 = vunpack.c.h.b16 %v277
  %v991 = vunpack.c.l.b16 %v278
  %v992 = vunpack.c.l.b16 %v279
  %v993 = vunpack.c.h.b16 %v279
  %v994 = vunpack.c.l.b16 %v280
  %v995 = vunpack.c.l.b16 %v281
  %v996 = vunpack.c.h.b16 %v281
  %v997 = vunpack.c.l.b16 %v282
  %v998 = vunpack.c.l.b16 %v283
  %v999 = vunpack.c.h.b16 %v283
  %v1000 = vunpack.c.l.b16 %v284
  %v1001 = vunpack.c.l.b16 %v285
  %v1002 = vunpack.c.h.b16 %v285
  %v1003 = vunpack.c.l.b16 %v286
  %v1004 = vunpack.c.l.b16 %v287
  %v1005 = vunpack.c.h.b16 %v287
  %v1006 = vunpack.c.l.b16 %v288
  %v1007 = vunpack.c.l.b16 %v289
  %v1008 = vunpack.c.h.b16 %v289
  %v1009 = vunpack.c.l.b16 %v290
  %v1010 = vunpack.c.l.b16 %v291
  %v1011 = vunpack.c.h.b16 %v291
  %v1012 = vunpack.c.l.b16 %v292
  %v1013 = vunpack.c.l.b16 %v293
  %v1014 = vunpack.c.h.b16 %v293
  %v1015 = vunpack.c.l.b16 %v294
  %v1016 = vpack.c.b16 %v683, %v680
  %v1017 = vpack.c.b16 %v684, %v681
  %v1018 = vpack.c.b16 %v685, %v682
  %v1019 = vpack.c.b16 %v689, %v686
  %v1020 = vpack.c.b16 %v690, %v687
  %v1021 = vpack.c.b16 %v691, %v688
  %v1022 = vpack.c.b16 %v695, %v692
  %v1023 = vpack.c.b16 %v696, %v693
  %v1024 = vpack.c.b16 %v697, %v694
  %v1025 = vpack.c.b16 %v701, %v698
  %v1026 = vpack.c.b16 %v702, %v699
  %v1027 = vpack.c.b16 %v703, %v700
  %v1028 = vpack.c.b16 %v707, %v704
  %v1029 = vpack.c.b16 %v708, %v705
  %v1030 = vpack.c.b16 %v709, %v706
  %v1031 = vpack.c.b16 %v713, %v710
  %v1032 = vpack.c.b16 %v714, %v711
  %v1033 = vpack.c.b16 %v715, %v712
  %v1034 = vpack.c.b16 %v719, %v716
  %v1035 = vpack.c.b16 %v720, %v717
  %v1036 = vpack.c.b16 %v721, %v718
  %v1037 = vpack.c.b16 %v725, %v722
  %v1038 = vpack.c.b16 %v726, %v723
  %v1039 = vpack.c.b16 %v727, %v724
  %v1040 = vpack.c.b16 %v731, %v728
  %v1041 = vpack.c.b16 %v732, %v729
  %v1042 = vpack.c.b16 %v733, %v730
  %v1043 = vpack.c.b16 %v737, %v734
  %v1044 = vpack.c.b16 %v738, %v735
  %v1045 = vpack.c.b16 %v739, %v736
  %v1046 = vpack.c.b16 %v743, %v740
  %v1047 = vpack.c.b16 %v744, %v741
  %v1048 = vpack.c.b16 %v745, %v742
  %v1049 = vpack.c.b16 %v749, %v746
  %v1050 = vpack.c.b16 %v750, %v747
  %v1051 = vpack.c.b16 %v751, %v748
  %v1052 = vpack.c.b16 %v755, %v752
  %v1053 = vpack.c.b16 %v756, %v753
  %v1054 = vpack.c.b16 %v757, %v754
  %v1055 = vpack.c.b16 %v761, %v758
  %v1056 = vpack.c.b16 %v762, %v759
  %v1057 = vpack.c.b16 %v763, %v760
  %v1058 = vpack.c.b16 %v767, %v764
  %v1059 = vpack.c.b16 %v768, %v765
  %v1060 = vpack.c.b16 %v769, %v766
  %v1061 = vpack.c.b16 %v773, %v770
  %v1062 = vpack.c.b16 %v774, %v771
  %v1063 = vpack.c.b16 %v775, %v772
  %v1064 = vpack.c.b16 %v779, %v776
  %v1065 = vpack.c.b16 %v780, %v777
  %v1066 = vpack.c.b16 %v781, %v778
  %v1067 = vpack.c.b16 %v785, %v782
  %v1068 = vpack.c.b16 %v786, %v783
  %v1069 = vpack.c.b16 %v787, %v784
  %v1070 = vpack.c.b16 %v791, %v788
  %v1071 = vpack.c.b16 %v792, %v789
  %v1072 = vpack.c.b16 %v793, %v790
  %v1073 = vpack.c.b16 %v797, %v794
  %v1074 = vpack.c.b16 %v798, %v795
  %v1075 = vpack.c.b16 %v799, %v796
  %v1076 = vpack.c.b16 %v803, %v800
  %v1077 = vpack.c.b16 %v804, %v801
  %v1078 = vpack.c.b16 %v805, %v802
  %v1079 = vpack.c.b16 %v809, %v806
  %v1080 = vpack.c.b16 %v810, %v807
  %v1081 = vpack.c.b16 %v811, %v808
  %v1082 = vpack.c.b16 %v815, %v812
  %v1083 = vpack.c.b16 %v816, %v813
  %v1084 = vpack.c.b16 %v817, %v814
  %v1085 = vpack.c.b16 %v821, %v818
  %v1086 = vpack.c.b16 %v822, %v819
  %v1087 = vpack.c.b16 %v823, %v820
  %v1088 = vpack.c.b16 %v827, %v824
  %v1089 = vpack.c.b16 %v828, %v825
  %v1090 = vpack.c.b16 %v829, %v826
  %v1091 = vpack.c.b16 %v833, %v830
  %v1092 = vpack.c.b16 %v834, %v831
  %v1093 = vpack.c.b16 %v835, %v832
  %v1094 = vpack.c.b16 %v839, %v836
  %v1095 = vpack.c.b16 %v840, %v837
  %v1096 = vpack.c.b16 %v841, %v838
  %v1097 = vpack.c.b16 %v845, %v842
  %v1098 = vpack.c.b16 %v846, %v843
  %v1099 = vpack.c.b16 %v847, %v844
  %v1100 = vpack.c.b16 %v851, %v848
  %v1101 = vpack.c.b16 %v852, %v849
  %v1102 = vpack.c.b16 %v853, %v850
  %v1103 = vpack.c.b16 %v857, %v854
  %v1104 = vpack.c.b16 %v858, %v855
  %v1105 = vpack.c.b16 %v859, %v856
  %v1106 = vpack.c.b16 %v863, %v860
  %v1107 = vpack.c.b16 %v864, %v861
  %v1108 = vpack.c.b16 %v865, %v862
  %v1109 = vpack.c.b16 %v869, %v866
  %v1110 = vpack.c.b16 %v870, %v867
  %v1111 = vpack.c.b16 %v871, %v868
  %v1112 = vpack.c.b16 %v875, %v872
  %v1113 = vpack.c.b16 %v876, %v873
  %v1114 = vpack.c.b16 %v877, %v874
  %v1115 = vpack.c.b16 %v881, %v878
  %v1116 = vpack.c.b16 %v882, %v879
  %v1117 = vpack.c.b16 %v883, %v880
  %v1118 = vpack.c.b16 %v887, %v884
  %v1119 = vpack.c.b16 %v888, %v885
  %v1120 = vpack.c.b16 %v889, %v886
  %v1121 = vpack.c.b16 %v893, %v890
  %v1122 = vpack.c.b16 %v894, %v891
  %v1123 = vpack.c.b16 %v895, %v892
  %v1124 = vpack.c.b16 %v899, %v896
  %v1125 = vpack.c.b16 %v900, %v897
  %v1126 = vpack.c.b16 %v901, %v898
  %v1127 = vpack.c.b16 %v905, %v902
  %v1128 = vpack.c.b16 %v906, %v903
  %v1129 = vpack.c.b16 %v907, %v904
  %v1130 = vpack.c.b16 %v911, %v908
  %v1131 = vpack.c.b16 %v912, %v909
  %v1132 = vpack.c.b16 %v913, %v910
  %v1133 = vpack.c.b16 %v917, %v914
  %v1134 = vpack.c.b16 %v918, %v915
  %v1135 = vpack.c.b16 %v919, %v916
  %v1136 = vpack.c.b16 %v923, %v920
  %v1137 = vpack.c.b16 %v924, %v921
  %v1138 = vpack.c.b16 %v925, %v922
  %v1139 = vpack.c.b16 %v929, %v926
  %v1140 = vpack.c.b16 %v930, %v927
  %v1141 = vpack.c.b16 %v931, %v928
  %v1142 = vpack.c.b16 %v935, %v932
  %v1143 = vpack.c.b16 %v936, %v933
  %v1144 = vpack.c.b16 %v937, %v934
  %v1145 = vpack.c.b16 %v941, %v938
  %v1146 = vpack.c.b16 %v942, %v939
  %v1147 = vpack.c.b16 %v943, %v940
  %v1148 = vpack.c.b16 %v947, %v944
  %v1149 = vpack.c.b16 %v948, %v945
  %v1150 = vpack.c.b16 %v949, %v946
  %v1151 = vpack.c.b16 %v953, %v950
  %v1152 = vpack.c.b16 %v954, %v951
  %v1153 = vpack.c.b16 %v955, %v952
  %v1154 = vpack.c.b16 %v959, %v956
  %v1155 = vpack.c.b16 %v960, %v957
  %v1156 = vpack.c.b16 %v961, %v958
  %v1157 = vpack.c.b16 %v965, %v962
  %v1158 = vpack.c.b16 %v966, %v963
  %v1159 = vpack.c.b16 %v967, %v964
  %v1160 = vpack.c.b16 %v971, %v968
  %v1161 = vpack.c.b16 %v972, %v969
  %v1162 = vpack.c.b16 %v973, %v970
  %v1163 = vpack.c.b16 %v977, %v974
  %v1164 = vpack.c.b16 %v978, %v975
  %v1165 = vpack.c.b16 %v979, %v976
  %v1166 = vpack.c.b16 %v983, %v980
  %v1167 = vpack.c.b16 %v984, %v981
  %v1168 = vpack.c.b16 %v985, %v982
  %v1169 = vpack.c.b16 %v989, %v986
  %v1170 = vpack.c.b16 %v990, %v987
  %v1171 = vpack.c.b16 %v991, %v988
  %v1172 = vpack.c.b16 %v995, %v992
  %v1173 = vpack.c.b16 %v996, %v993
  %v1174 = vpack.c.b16 %v997, %v994
  %v1175 = vpack.c.b16 %v1001, %v998
  %v1176 = vpack.c.b16 %v1002, %v999
  %v1177 = vpack.c.b16 %v1003, %v1000
  %v1178 = vpack.c.b16 %v1007, %v1004
  %v1179 = vpack.c.b16 %v1008, %v1005
  %v1180 = vpack.c.b16 %v1009, %v1006
  %v1181 = vpack.c.b16 %v1013, %v1010
  %v1182 = vpack.c.b16 %v1014, %v1011
  %v1183 = vpack.c.b16 %v1015, %v1012
  %1352 = vmatprep.subr.bf16.mxu0 %v1017
  %1353 = vmatpush1.bf16.msra.mxu0 %v1016
  %1354 = vmatprep.subr.bf16.mxu0 %v1020
  %1355 = vmatpush1.bf16.msra.mxu0 %v1019
  %1356 = vmatprep.subr.bf16.mxu0 %v1023
  %1357 = vmatpush1.bf16.msra.mxu0 %v1022
  %1358 = vmatprep.subr.bf16.mxu0 %v1026
  %1359 = vmatpush1.bf16.msra.mxu0 %v1025
  %1360 = vmatprep.subr.bf16.mxu0 %v1029
  %1361 = vmatpush1.bf16.msra.mxu0 %v1028
  %1362 = vmatprep.subr.bf16.mxu0 %v1032
  %1363 = vmatpush1.bf16.msra.mxu0 %v1031
  %1364 = vmatprep.subr.bf16.mxu0 %v1035
  %1365 = vmatpush1.bf16.msra.mxu0 %v1034
  %1366 = vmatprep.subr.bf16.mxu0 %v1038
  %1367 = vmatpush1.bf16.msra.mxu0 %v1037
  %1368 = vmatprep.subr.bf16.mxu0 %v1041
  %1369 = vmatpush1.bf16.msra.mxu0 %v1040
  %1370 = vmatprep.subr.bf16.mxu0 %v1044
  %1371 = vmatpush1.bf16.msra.mxu0 %v1043
  %1372 = vmatprep.subr.bf16.mxu0 %v1047
  %1373 = vmatpush1.bf16.msra.mxu0 %v1046
  %1374 = vmatprep.subr.bf16.mxu0 %v1050
  %1375 = vmatpush1.bf16.msra.mxu0 %v1049
  %1376 = vmatprep.subr.bf16.mxu0 %v1053
  %1377 = vmatpush1.bf16.msra.mxu0 %v1052
  %1378 = vmatprep.subr.bf16.mxu0 %v1056
  %1379 = vmatpush1.bf16.msra.mxu0 %v1055
  %1380 = vmatprep.subr.bf16.mxu0 %v1059
  %1381 = vmatpush1.bf16.msra.mxu0 %v1058
  %1382 = vmatprep.subr.bf16.mxu0 %v1062
  %1383 = vmatpush1.bf16.msra.mxu0 %v1061
  %1384 = vmatprep.mubr.bf16.mxu0 %v401
  %1385 = vmatmul.mubr.bf16.gmra.mrb[0].mxu0 %v400
  %v1386 = vpop.f32.mrb[0].mxu0
  %v1387 = vadd.f32 %v300, %v1386
  %v1388 = vpop.f32.mrb[0].mxu0
  %v1389 = vadd.f32 %v304, %v1388
  %v1390 = vpop.f32.mrb[0].mxu0
  %v1391 = vadd.f32 %v300, %v1390
  %v1392 = vpop.f32.mrb[0].mxu0
  %v1393 = vadd.f32 %v304, %v1392
  %1394 = vmatprep.mubr.bf16.mxu0 %v408
  %1395 = vmatmul.mubr.bf16.gmra.mrb[0].mxu0 %v407
  %v1396 = vpop.f32.mrb[0].mxu0
  %v1397 = vadd.f32 %v300, %v1396
  %v1398 = vpop.f32.mrb[0].mxu0
  %v1399 = vadd.f32 %v304, %v1398
  %v1400 = vpop.f32.mrb[0].mxu0
  %v1401 = vadd.f32 %v300, %v1400
  %v1402 = vpop.f32.mrb[0].mxu0
  %v1403 = vadd.f32 %v304, %v1402
  %1404 = vmatprep.mubr.bf16.mxu0 %v415
  %1405 = vmatmul.mubr.bf16.gmra.mrb[0].mxu0 %v414
  %v1406 = vpop.f32.mrb[0].mxu0
  %v1407 = vadd.f32 %v300, %v1406
  %v1408 = vpop.f32.mrb[0].mxu0
  %v1409 = vadd.f32 %v304, %v1408
  %v1410 = vpop.f32.mrb[0].mxu0
  %v1411 = vadd.f32 %v300, %v1410
  %v1412 = vpop.f32.mrb[0].mxu0
  %v1413 = vadd.f32 %v304, %v1412
  %1414 = vmatprep.mubr.bf16.mxu0 %v422
  %1415 = vmatmul.mubr.bf16.gmra.mrb[0].mxu0 %v421
  %v1416 = vpop.f32.mrb[0].mxu0
  %v1417 = vadd.f32 %v300, %v1416
  %v1418 = vpop.f32.mrb[0].mxu0
  %v1419 = vadd.f32 %v304, %v1418
  %v1420 = vpop.f32.mrb[0].mxu0
  %v1421 = vadd.f32 %v300, %v1420
  %v1422 = vpop.f32.mrb[0].mxu0
  %v1423 = vadd.f32 %v304, %v1422
  %1424 = vdwg.mxu0
  %1425 = vmatprep.subr.bf16.mxu0 %v1065
  %1426 = vmatpush1.bf16.msra.mxu0 %v1064
  %1427 = vmatprep.subr.bf16.mxu0 %v1068
  %1428 = vmatpush1.bf16.msra.mxu0 %v1067
  %1429 = vmatprep.subr.bf16.mxu0 %v1071
  %1430 = vmatpush1.bf16.msra.mxu0 %v1070
  %1431 = vmatprep.subr.bf16.mxu0 %v1074
  %1432 = vmatpush1.bf16.msra.mxu0 %v1073
  %1433 = vmatprep.subr.bf16.mxu0 %v1077
  %1434 = vmatpush1.bf16.msra.mxu0 %v1076
  %1435 = vmatprep.subr.bf16.mxu0 %v1080
  %1436 = vmatpush1.bf16.msra.mxu0 %v1079
  %1437 = vmatprep.subr.bf16.mxu0 %v1083
  %1438 = vmatpush1.bf16.msra.mxu0 %v1082
  %1439 = vmatprep.subr.bf16.mxu0 %v1086
  %1440 = vmatpush1.bf16.msra.mxu0 %v1085
  %1441 = vmatprep.subr.bf16.mxu0 %v1089
  %1442 = vmatpush1.bf16.msra.mxu0 %v1088
  %1443 = vmatprep.subr.bf16.mxu0 %v1092
  %1444 = vmatpush1.bf16.msra.mxu0 %v1091
  %1445 = vmatprep.subr.bf16.mxu0 %v1095
  %1446 = vmatpush1.bf16.msra.mxu0 %v1094
  %1447 = vmatprep.subr.bf16.mxu0 %v1098
  %1448 = vmatpush1.bf16.msra.mxu0 %v1097
  %1449 = vmatprep.subr.bf16.mxu0 %v1101
  %1450 = vmatpush1.bf16.msra.mxu0 %v1100
  %1451 = vmatprep.subr.bf16.mxu0 %v1104
  %1452 = vmatpush1.bf16.msra.mxu0 %v1103
  %1453 = vmatprep.subr.bf16.mxu0 %v1107
  %1454 = vmatpush1.bf16.msra.mxu0 %v1106
  %1455 = vmatprep.subr.bf16.mxu0 %v1110
  %1456 = vmatpush1.bf16.msra.mxu0 %v1109
  %1457 = vmatprep.mubr.bf16.mxu0 %v403
  %1458 = vmatmul.mubr.bf16.gmra.mrb[0].mxu0 %v402
  %v1459 = vpop.f32.mrb[0].mxu0
  %v1460 = vadd.f32 %v1387, %v1459
  %v1461 = vpop.f32.mrb[0].mxu0
  %v1462 = vadd.f32 %v1389, %v1461
  %v1463 = vpop.f32.mrb[0].mxu0
  %v1464 = vadd.f32 %v1391, %v1463
  %v1465 = vpop.f32.mrb[0].mxu0
  %v1466 = vadd.f32 %v1393, %v1465
  %1467 = vmatprep.mubr.bf16.mxu0 %v410
  %1468 = vmatmul.mubr.bf16.gmra.mrb[0].mxu0 %v409
  %v1469 = vpop.f32.mrb[0].mxu0
  %v1470 = vadd.f32 %v1397, %v1469
  %v1471 = vpop.f32.mrb[0].mxu0
  %v1472 = vadd.f32 %v1399, %v1471
  %v1473 = vpop.f32.mrb[0].mxu0
  %v1474 = vadd.f32 %v1401, %v1473
  %v1475 = vpop.f32.mrb[0].mxu0
  %v1476 = vadd.f32 %v1403, %v1475
  %1477 = vmatprep.mubr.bf16.mxu0 %v417
  %1478 = vmatmul.mubr.bf16.gmra.mrb[0].mxu0 %v416
  %v1479 = vpop.f32.mrb[0].mxu0
  %v1480 = vadd.f32 %v1407, %v1479
  %v1481 = vpop.f32.mrb[0].mxu0
  %v1482 = vadd.f32 %v1409, %v1481
  %v1483 = vpop.f32.mrb[0].mxu0
  %v1484 = vadd.f32 %v1411, %v1483
  %v1485 = vpop.f32.mrb[0].mxu0
  %v1486 = vadd.f32 %v1413, %v1485
  %1487 = vmatprep.mubr.bf16.mxu0 %v424
  %1488 = vmatmul.mubr.bf16.gmra.mrb[0].mxu0 %v423
  %v1489 = vpop.f32.mrb[0].mxu0
  %v1490 = vadd.f32 %v1417, %v1489
  %v1491 = vpop.f32.mrb[0].mxu0
  %v1492 = vadd.f32 %v1419, %v1491
  %v1493 = vpop.f32.mrb[0].mxu0
  %v1494 = vadd.f32 %v1421, %v1493
  %v1495 = vpop.f32.mrb[0].mxu0
  %v1496 = vadd.f32 %v1423, %v1495
  %1497 = vdwg.mxu0
  %1498 = vmatprep.subr.bf16.mxu0 %v1113
  %1499 = vmatpush1.bf16.msra.mxu0 %v1112
  %1500 = vmatprep.subr.bf16.mxu0 %v1116
  %1501 = vmatpush1.bf16.msra.mxu0 %v1115
  %1502 = vmatprep.subr.bf16.mxu0 %v1119
  %1503 = vmatpush1.bf16.msra.mxu0 %v1118
  %1504 = vmatprep.subr.bf16.mxu0 %v1122
  %1505 = vmatpush1.bf16.msra.mxu0 %v1121
  %1506 = vmatprep.subr.bf16.mxu0 %v1125
  %1507 = vmatpush1.bf16.msra.mxu0 %v1124
  %1508 = vmatprep.subr.bf16.mxu0 %v1128
  %1509 = vmatpush1.bf16.msra.mxu0 %v1127
  %1510 = vmatprep.subr.bf16.mxu0 %v1131
  %1511 = vmatpush1.bf16.msra.mxu0 %v1130
  %1512 = vmatprep.subr.bf16.mxu0 %v1134
  %1513 = vmatpush1.bf16.msra.mxu0 %v1133
  %1514 = vmatprep.subr.bf16.mxu0 %v1137
  %1515 = vmatpush1.bf16.msra.mxu0 %v1136
  %1516 = vmatprep.subr.bf16.mxu0 %v1140
  %1517 = vmatpush1.bf16.msra.mxu0 %v1139
  %1518 = vmatprep.subr.bf16.mxu0 %v1143
  %1519 = vmatpush1.bf16.msra.mxu0 %v1142
  %1520 = vmatprep.subr.bf16.mxu0 %v1146
  %1521 = vmatpush1.bf16.msra.mxu0 %v1145
  %1522 = vmatprep.subr.bf16.mxu0 %v1149
  %1523 = vmatpush1.bf16.msra.mxu0 %v1148
  %1524 = vmatprep.subr.bf16.mxu0 %v1152
  %1525 = vmatpush1.bf16.msra.mxu0 %v1151
  %1526 = vmatprep.subr.bf16.mxu0 %v1155
  %1527 = vmatpush1.bf16.msra.mxu0 %v1154
  %1528 = vmatprep.subr.bf16.mxu0 %v1158
  %1529 = vmatpush1.bf16.msra.mxu0 %v1157
  %1530 = vmatprep.mubr.bf16.mxu0 %v405
  %1531 = vmatmul.mubr.bf16.gmra.mrb[0].mxu0 %v404
  %v1532 = vpop.f32.mrb[0].mxu0
  %v1533 = vadd.f32 %v1460, %v1532
  %v1534 = vpop.f32.mrb[0].mxu0
  %v1535 = vadd.f32 %v1462, %v1534
  %v1536 = vpop.f32.mrb[0].mxu0
  %v1537 = vadd.f32 %v1464, %v1536
  %v1538 = vpop.f32.mrb[0].mxu0
  %v1539 = vadd.f32 %v1466, %v1538
  %1540 = vmatprep.mubr.bf16.mxu0 %v412
  %1541 = vmatmul.mubr.bf16.gmra.mrb[0].mxu0 %v411
  %v1542 = vpop.f32.mrb[0].mxu0
  %v1543 = vadd.f32 %v1470, %v1542
  %v1544 = vpop.f32.mrb[0].mxu0
  %v1545 = vadd.f32 %v1472, %v1544
  %v1546 = vpop.f32.mrb[0].mxu0
  %v1547 = vadd.f32 %v1474, %v1546
  %v1548 = vpop.f32.mrb[0].mxu0
  %v1549 = vadd.f32 %v1476, %v1548
  %1550 = vmatprep.mubr.bf16.mxu0 %v419
  %1551 = vmatmul.mubr.bf16.gmra.mrb[0].mxu0 %v418
  %v1552 = vpop.f32.mrb[0].mxu0
  %v1553 = vadd.f32 %v1480, %v1552
  %v1554 = vpop.f32.mrb[0].mxu0
  %v1555 = vadd.f32 %v1482, %v1554
  %v1556 = vpop.f32.mrb[0].mxu0
  %v1557 = vadd.f32 %v1484, %v1556
  %v1558 = vpop.f32.mrb[0].mxu0
  %v1559 = vadd.f32 %v1486, %v1558
  %1560 = vmatprep.mubr.bf16.mxu0 %v426
  %1561 = vmatmul.mubr.bf16.gmra.mrb[0].mxu0 %v425
  %v1562 = vpop.f32.mrb[0].mxu0
  %v1563 = vadd.f32 %v1490, %v1562
  %v1564 = vpop.f32.mrb[0].mxu0
  %v1565 = vadd.f32 %v1492, %v1564
  %v1566 = vpop.f32.mrb[0].mxu0
  %v1567 = vadd.f32 %v1494, %v1566
  %v1568 = vpop.f32.mrb[0].mxu0
  %v1569 = vadd.f32 %v1496, %v1568
  %1570 = vdwg.mxu0
  %1571 = vmatprep.subr.bf16.mxu0 %v1161
  %1572 = vmatpush1.bf16.msra.mxu0 %v1160
  %1573 = vmatprep.subr.bf16.mxu0 %v1164
  %1574 = vmatpush1.bf16.msra.mxu0 %v1163
  %1575 = vmatprep.subr.bf16.mxu0 %v1167
  %1576 = vmatpush1.bf16.msra.mxu0 %v1166
  %1577 = vmatprep.subr.bf16.mxu0 %v1170
  %1578 = vmatpush1.bf16.msra.mxu0 %v1169
  %1579 = vmatprep.subr.bf16.mxu0 %v1173
  %1580 = vmatpush1.bf16.msra.mxu0 %v1172
  %1581 = vmatprep.subr.bf16.mxu0 %v1176
  %1582 = vmatpush1.bf16.msra.mxu0 %v1175
  %1583 = vmatprep.subr.bf16.mxu0 %v1179
  %1584 = vmatpush1.bf16.msra.mxu0 %v1178
  %1585 = vmatprep.subr.bf16.mxu0 %v1182
  %1586 = vmatpush1.bf16.msra.mxu0 %v1181
  %1587 = vmatprep.subr.bf16.mxu0 0
  %1588 = vmatpush1.bf16.msra.mxu0 0
  %1589 = vmatprep.subr.bf16.mxu0 0
  %1590 = vmatpush1.bf16.msra.mxu0 0
  %1591 = vmatprep.subr.bf16.mxu0 0
  %1592 = vmatpush1.bf16.msra.mxu0 0
  %1593 = vmatprep.subr.bf16.mxu0 0
  %1594 = vmatpush1.bf16.msra.mxu0 0
  %1595 = vmatprep.subr.bf16.mxu0 0
  %1596 = vmatpush1.bf16.msra.mxu0 0
  %1597 = vmatprep.subr.bf16.mxu0 0
  %1598 = vmatpush1.bf16.msra.mxu0 0
  %1599 = vmatprep.subr.bf16.mxu0 0
  %1600 = vmatpush1.bf16.msra.mxu0 0
  %1601 = vmatprep.subr.bf16.mxu0 0
  %1602 = vmatpush1.bf16.msra.mxu0 0
  %1603 = vmatprep.mubr.bf16.mxu0 0
  %1604 = vmatmul.mubr.bf16.gmra.mrb[0].mxu0 %v406
  %v1605 = vpop.f32.mrb[0].mxu0
  %v1606 = vadd.f32 %v1533, %v1605
  %v1607 = vpop.f32.mrb[0].mxu0
  %v1608 = vadd.f32 %v1535, %v1607
  %v1609 = vpop.f32.mrb[0].mxu0
  %v1610 = vadd.f32 %v1537, %v1609
  %v1611 = vpop.f32.mrb[0].mxu0
  %v1612 = vadd.f32 %v1539, %v1611
  %1613 = vmatprep.mubr.bf16.mxu0 0
  %1614 = vmatmul.mubr.bf16.gmra.mrb[0].mxu0 %v413
  %v1615 = vpop.f32.mrb[0].mxu0
  %v1616 = vadd.f32 %v1543, %v1615
  %v1617 = vpop.f32.mrb[0].mxu0
  %v1618 = vadd.f32 %v1545, %v1617
  %v1619 = vpop.f32.mrb[0].mxu0
  %v1620 = vadd.f32 %v1547, %v1619
  %v1621 = vpop.f32.mrb[0].mxu0
  %v1622 = vadd.f32 %v1549, %v1621
  %1623 = vmatprep.mubr.bf16.mxu0 0
  %1624 = vmatmul.mubr.bf16.gmra.mrb[0].mxu0 %v420
  %v1625 = vpop.f32.mrb[0].mxu0
  %v1626 = vadd.f32 %v1553, %v1625
  %v1627 = vpop.f32.mrb[0].mxu0
  %v1628 = vadd.f32 %v1555, %v1627
  %v1629 = vpop.f32.mrb[0].mxu0
  %v1630 = vadd.f32 %v1557, %v1629
  %v1631 = vpop.f32.mrb[0].mxu0
  %v1632 = vadd.f32 %v1559, %v1631
  %1633 = vmatprep.mubr.bf16.mxu0 0
  %1634 = vmatmul.mubr.bf16.gmra.mrb[0].mxu0 %v427
  %v1635 = vpop.f32.mrb[0].mxu0
  %v1636 = vadd.f32 %v1563, %v1635
  %v1637 = vpop.f32.mrb[0].mxu0
  %v1638 = vadd.f32 %v1565, %v1637
  %v1639 = vpop.f32.mrb[0].mxu0
  %v1640 = vadd.f32 %v1567, %v1639
  %v1641 = vpop.f32.mrb[0].mxu0
  %v1642 = vadd.f32 %v1569, %v1641
  %1643 = vdwg.mxu0
  %1644 = vmatprep.subr.bf16.mxu0 0
  %1645 = vmatpush1.bf16.msra.mxu0 %v1018
  %1646 = vmatprep.subr.bf16.mxu0 0
  %1647 = vmatpush1.bf16.msra.mxu0 %v1021
  %1648 = vmatprep.subr.bf16.mxu0 0
  %1649 = vmatpush1.bf16.msra.mxu0 %v1024
  %1650 = vmatprep.subr.bf16.mxu0 0
  %1651 = vmatpush1.bf16.msra.mxu0 %v1027
  %1652 = vmatprep.subr.bf16.mxu0 0
  %1653 = vmatpush1.bf16.msra.mxu0 %v1030
  %1654 = vmatprep.subr.bf16.mxu0 0
  %1655 = vmatpush1.bf16.msra.mxu0 %v1033
  %1656 = vmatprep.subr.bf16.mxu0 0
  %1657 = vmatpush1.bf16.msra.mxu0 %v1036
  %1658 = vmatprep.subr.bf16.mxu0 0
  %1659 = vmatpush1.bf16.msra.mxu0 %v1039
  %1660 = vmatprep.subr.bf16.mxu0 0
  %1661 = vmatpush1.bf16.msra.mxu0 %v1042
  %1662 = vmatprep.subr.bf16.mxu0 0
  %1663 = vmatpush1.bf16.msra.mxu0 %v1045
  %1664 = vmatprep.subr.bf16.mxu0 0
  %1665 = vmatpush1.bf16.msra.mxu0 %v1048
  %1666 = vmatprep.subr.bf16.mxu0 0
  %1667 = vmatpush1.bf16.msra.mxu0 %v1051
  %1668 = vmatprep.subr.bf16.mxu0 0
  %1669 = vmatpush1.bf16.msra.mxu0 %v1054
  %1670 = vmatprep.subr.bf16.mxu0 0
  %1671 = vmatpush1.bf16.msra.mxu0 %v1057
  %1672 = vmatprep.subr.bf16.mxu0 0
  %1673 = vmatpush1.bf16.msra.mxu0 %v1060
  %1674 = vmatprep.subr.bf16.mxu0 0
  %1675 = vmatpush1.bf16.msra.mxu0 %v1063
  %1676 = vmatprep.mubr.bf16.mxu0 %v401
  %1677 = vmatmul.mubr.bf16.gmra.mrb[0].mxu0 %v400
  %v1678 = vpop.f32.mrb[0].mxu0
  %v1679 = vadd.f32 %v308, %v1678
  %v1680 = vpop.f32.mrb[0].mxu0
  %v1681 = vpop.f32.mrb[0].mxu0
  %v1682 = vadd.f32 %v308, %v1681
  %v1683 = vpop.f32.mrb[0].mxu0
  %1684 = vmatprep.mubr.bf16.mxu0 %v408
  %1685 = vmatmul.mubr.bf16.gmra.mrb[0].mxu0 %v407
  %v1686 = vpop.f32.mrb[0].mxu0
  %v1687 = vadd.f32 %v308, %v1686
  %v1688 = vpop.f32.mrb[0].mxu0
  %v1689 = vpop.f32.mrb[0].mxu0
  %v1690 = vadd.f32 %v308, %v1689
  %v1691 = vpop.f32.mrb[0].mxu0
  %1692 = vmatprep.mubr.bf16.mxu0 %v415
  %1693 = vmatmul.mubr.bf16.gmra.mrb[0].mxu0 %v414
  %v1694 = vpop.f32.mrb[0].mxu0
  %v1695 = vadd.f32 %v308, %v1694
  %v1696 = vpop.f32.mrb[0].mxu0
  %v1697 = vpop.f32.mrb[0].mxu0
  %v1698 = vadd.f32 %v308, %v1697
  %v1699 = vpop.f32.mrb[0].mxu0
  %1700 = vmatprep.mubr.bf16.mxu0 %v422
  %1701 = vmatmul.mubr.bf16.gmra.mrb[0].mxu0 %v421
  %v1702 = vpop.f32.mrb[0].mxu0
  %v1703 = vadd.f32 %v308, %v1702
  %v1704 = vpop.f32.mrb[0].mxu0
  %v1705 = vpop.f32.mrb[0].mxu0
  %v1706 = vadd.f32 %v308, %v1705
  %v1707 = vpop.f32.mrb[0].mxu0
  %1708 = vdwg.mxu0
  %1709 = vmatprep.subr.bf16.mxu0 0
  %1710 = vmatpush1.bf16.msra.mxu0 %v1066
  %1711 = vmatprep.subr.bf16.mxu0 0
  %1712 = vmatpush1.bf16.msra.mxu0 %v1069
  %1713 = vmatprep.subr.bf16.mxu0 0
  %1714 = vmatpush1.bf16.msra.mxu0 %v1072
  %1715 = vmatprep.subr.bf16.mxu0 0
  %1716 = vmatpush1.bf16.msra.mxu0 %v1075
  %1717 = vmatprep.subr.bf16.mxu0 0
  %1718 = vmatpush1.bf16.msra.mxu0 %v1078
  %1719 = vmatprep.subr.bf16.mxu0 0
  %1720 = vmatpush1.bf16.msra.mxu0 %v1081
  %1721 = vmatprep.subr.bf16.mxu0 0
  %1722 = vmatpush1.bf16.msra.mxu0 %v1084
  %1723 = vmatprep.subr.bf16.mxu0 0
  %1724 = vmatpush1.bf16.msra.mxu0 %v1087
  %1725 = vmatprep.subr.bf16.mxu0 0
  %1726 = vmatpush1.bf16.msra.mxu0 %v1090
  %1727 = vmatprep.subr.bf16.mxu0 0
  %1728 = vmatpush1.bf16.msra.mxu0 %v1093
  %1729 = vmatprep.subr.bf16.mxu0 0
  %1730 = vmatpush1.bf16.msra.mxu0 %v1096
  %1731 = vmatprep.subr.bf16.mxu0 0
  %1732 = vmatpush1.bf16.msra.mxu0 %v1099
  %1733 = vmatprep.subr.bf16.mxu0 0
  %1734 = vmatpush1.bf16.msra.mxu0 %v1102
  %1735 = vmatprep.subr.bf16.mxu0 0
  %1736 = vmatpush1.bf16.msra.mxu0 %v1105
  %1737 = vmatprep.subr.bf16.mxu0 0
  %1738 = vmatpush1.bf16.msra.mxu0 %v1108
  %1739 = vmatprep.subr.bf16.mxu0 0
  %1740 = vmatpush1.bf16.msra.mxu0 %v1111
  %1741 = vmatprep.mubr.bf16.mxu0 %v403
  %1742 = vmatmul.mubr.bf16.gmra.mrb[0].mxu0 %v402
  %v1743 = vpop.f32.mrb[0].mxu0
  %v1744 = vadd.f32 %v1679, %v1743
  %v1745 = vpop.f32.mrb[0].mxu0
  %v1746 = vpop.f32.mrb[0].mxu0
  %v1747 = vadd.f32 %v1682, %v1746
  %v1748 = vpop.f32.mrb[0].mxu0
  %1749 = vmatprep.mubr.bf16.mxu0 %v410
  %1750 = vmatmul.mubr.bf16.gmra.mrb[0].mxu0 %v409
  %v1751 = vpop.f32.mrb[0].mxu0
  %v1752 = vadd.f32 %v1687, %v1751
  %v1753 = vpop.f32.mrb[0].mxu0
  %v1754 = vpop.f32.mrb[0].mxu0
  %v1755 = vadd.f32 %v1690, %v1754
  %v1756 = vpop.f32.mrb[0].mxu0
  %1757 = vmatprep.mubr.bf16.mxu0 %v417
  %1758 = vmatmul.mubr.bf16.gmra.mrb[0].mxu0 %v416
  %v1759 = vpop.f32.mrb[0].mxu0
  %v1760 = vadd.f32 %v1695, %v1759
  %v1761 = vpop.f32.mrb[0].mxu0
  %v1762 = vpop.f32.mrb[0].mxu0
  %v1763 = vadd.f32 %v1698, %v1762
  %v1764 = vpop.f32.mrb[0].mxu0
  %1765 = vmatprep.mubr.bf16.mxu0 %v424
  %1766 = vmatmul.mubr.bf16.gmra.mrb[0].mxu0 %v423
  %v1767 = vpop.f32.mrb[0].mxu0
  %v1768 = vadd.f32 %v1703, %v1767
  %v1769 = vpop.f32.mrb[0].mxu0
  %v1770 = vpop.f32.mrb[0].mxu0
  %v1771 = vadd.f32 %v1706, %v1770
  %v1772 = vpop.f32.mrb[0].mxu0
  %1773 = vdwg.mxu0
  %1774 = vmatprep.subr.bf16.mxu0 0
  %1775 = vmatpush1.bf16.msra.mxu0 %v1114
  %1776 = vmatprep.subr.bf16.mxu0 0
  %1777 = vmatpush1.bf16.msra.mxu0 %v1117
  %1778 = vmatprep.subr.bf16.mxu0 0
  %1779 = vmatpush1.bf16.msra.mxu0 %v1120
  %1780 = vmatprep.subr.bf16.mxu0 0
  %1781 = vmatpush1.bf16.msra.mxu0 %v1123
  %1782 = vmatprep.subr.bf16.mxu0 0
  %1783 = vmatpush1.bf16.msra.mxu0 %v1126
  %1784 = vmatprep.subr.bf16.mxu0 0
  %1785 = vmatpush1.bf16.msra.mxu0 %v1129
  %1786 = vmatprep.subr.bf16.mxu0 0
  %1787 = vmatpush1.bf16.msra.mxu0 %v1132
  %1788 = vmatprep.subr.bf16.mxu0 0
  %1789 = vmatpush1.bf16.msra.mxu0 %v1135
  %1790 = vmatprep.subr.bf16.mxu0 0
  %1791 = vmatpush1.bf16.msra.mxu0 %v1138
  %1792 = vmatprep.subr.bf16.mxu0 0
  %1793 = vmatpush1.bf16.msra.mxu0 %v1141
  %1794 = vmatprep.subr.bf16.mxu0 0
  %1795 = vmatpush1.bf16.msra.mxu0 %v1144
  %1796 = vmatprep.subr.bf16.mxu0 0
  %1797 = vmatpush1.bf16.msra.mxu0 %v1147
  %1798 = vmatprep.subr.bf16.mxu0 0
  %1799 = vmatpush1.bf16.msra.mxu0 %v1150
  %1800 = vmatprep.subr.bf16.mxu0 0
  %1801 = vmatpush1.bf16.msra.mxu0 %v1153
  %1802 = vmatprep.subr.bf16.mxu0 0
  %1803 = vmatpush1.bf16.msra.mxu0 %v1156
  %1804 = vmatprep.subr.bf16.mxu0 0
  %1805 = vmatpush1.bf16.msra.mxu0 %v1159
  %1806 = vmatprep.mubr.bf16.mxu0 %v405
  %1807 = vmatmul.mubr.bf16.gmra.mrb[0].mxu0 %v404
  %v1808 = vpop.f32.mrb[0].mxu0
  %v1809 = vadd.f32 %v1744, %v1808
  %v1810 = vpop.f32.mrb[0].mxu0
  %v1811 = vpop.f32.mrb[0].mxu0
  %v1812 = vadd.f32 %v1747, %v1811
  %v1813 = vpop.f32.mrb[0].mxu0
  %1814 = vmatprep.mubr.bf16.mxu0 %v412
  %1815 = vmatmul.mubr.bf16.gmra.mrb[0].mxu0 %v411
  %v1816 = vpop.f32.mrb[0].mxu0
  %v1817 = vadd.f32 %v1752, %v1816
  %v1818 = vpop.f32.mrb[0].mxu0
  %v1819 = vpop.f32.mrb[0].mxu0
  %v1820 = vadd.f32 %v1755, %v1819
  %v1821 = vpop.f32.mrb[0].mxu0
  %1822 = vmatprep.mubr.bf16.mxu0 %v419
  %1823 = vmatmul.mubr.bf16.gmra.mrb[0].mxu0 %v418
  %v1824 = vpop.f32.mrb[0].mxu0
  %v1825 = vadd.f32 %v1760, %v1824
  %v1826 = vpop.f32.mrb[0].mxu0
  %v1827 = vpop.f32.mrb[0].mxu0
  %v1828 = vadd.f32 %v1763, %v1827
  %v1829 = vpop.f32.mrb[0].mxu0
  %1830 = vmatprep.mubr.bf16.mxu0 %v426
  %1831 = vmatmul.mubr.bf16.gmra.mrb[0].mxu0 %v425
  %v1832 = vpop.f32.mrb[0].mxu0
  %v1833 = vadd.f32 %v1768, %v1832
  %v1834 = vpop.f32.mrb[0].mxu0
  %v1835 = vpop.f32.mrb[0].mxu0
  %v1836 = vadd.f32 %v1771, %v1835
  %v1837 = vpop.f32.mrb[0].mxu0
  %1838 = vdwg.mxu0
  %1839 = vmatprep.subr.bf16.mxu0 0
  %1840 = vmatpush1.bf16.msra.mxu0 %v1162
  %1841 = vmatprep.subr.bf16.mxu0 0
  %1842 = vmatpush1.bf16.msra.mxu0 %v1165
  %1843 = vmatprep.subr.bf16.mxu0 0
  %1844 = vmatpush1.bf16.msra.mxu0 %v1168
  %1845 = vmatprep.subr.bf16.mxu0 0
  %1846 = vmatpush1.bf16.msra.mxu0 %v1171
  %1847 = vmatprep.subr.bf16.mxu0 0
  %1848 = vmatpush1.bf16.msra.mxu0 %v1174
  %1849 = vmatprep.subr.bf16.mxu0 0
  %1850 = vmatpush1.bf16.msra.mxu0 %v1177
  %1851 = vmatprep.subr.bf16.mxu0 0
  %1852 = vmatpush1.bf16.msra.mxu0 %v1180
  %1853 = vmatprep.subr.bf16.mxu0 0
  %1854 = vmatpush1.bf16.msra.mxu0 %v1183
  %1855 = vmatprep.subr.bf16.mxu0 0
  %1856 = vmatpush1.bf16.msra.mxu0 0
  %1857 = vmatprep.subr.bf16.mxu0 0
  %1858 = vmatpush1.bf16.msra.mxu0 0
  %1859 = vmatprep.subr.bf16.mxu0 0
  %1860 = vmatpush1.bf16.msra.mxu0 0
  %1861 = vmatprep.subr.bf16.mxu0 0
  %1862 = vmatpush1.bf16.msra.mxu0 0
  %1863 = vmatprep.subr.bf16.mxu0 0
  %1864 = vmatpush1.bf16.msra.mxu0 0
  %1865 = vmatprep.subr.bf16.mxu0 0
  %1866 = vmatpush1.bf16.msra.mxu0 0
  %1867 = vmatprep.subr.bf16.mxu0 0
  %1868 = vmatpush1.bf16.msra.mxu0 0
  %1869 = vmatprep.subr.bf16.mxu0 0
  %1870 = vmatpush1.bf16.msra.mxu0 0
  %1871 = vmatprep.mubr.bf16.mxu0 0
  %1872 = vmatmul.mubr.bf16.gmra.mrb[0].mxu0 %v406
  %v1873 = vpop.f32.mrb[0].mxu0
  %v1874 = vadd.f32 %v1809, %v1873
  %v1875 = vpop.f32.mrb[0].mxu0
  %v1876 = vpop.f32.mrb[0].mxu0
  %v1877 = vadd.f32 %v1812, %v1876
  %v1878 = vpop.f32.mrb[0].mxu0
  %1879 = vmatprep.mubr.bf16.mxu0 0
  %1880 = vmatmul.mubr.bf16.gmra.mrb[0].mxu0 %v413
  %v1881 = vpop.f32.mrb[0].mxu0
  %v1882 = vadd.f32 %v1817, %v1881
  %v1883 = vpop.f32.mrb[0].mxu0
  %v1884 = vpop.f32.mrb[0].mxu0
  %v1885 = vadd.f32 %v1820, %v1884
  %v1886 = vpop.f32.mrb[0].mxu0
  %1887 = vmatprep.mubr.bf16.mxu0 0
  %1888 = vmatmul.mubr.bf16.gmra.mrb[0].mxu0 %v420
  %v1889 = vpop.f32.mrb[0].mxu0
  %v1890 = vadd.f32 %v1825, %v1889
  %v1891 = vpop.f32.mrb[0].mxu0
  %v1892 = vpop.f32.mrb[0].mxu0
  %v1893 = vadd.f32 %v1828, %v1892
  %v1894 = vpop.f32.mrb[0].mxu0
  %1895 = vmatprep.mubr.bf16.mxu0 0
  %1896 = vmatmul.mubr.bf16.gmra.mrb[0].mxu0 %v427
  %v1897 = vpop.f32.mrb[0].mxu0
  %v1898 = vadd.f32 %v1833, %v1897
  %v1899 = vpop.f32.mrb[0].mxu0
  %v1900 = vpop.f32.mrb[0].mxu0
  %v1901 = vadd.f32 %v1836, %v1900
  %v1902 = vpop.f32.mrb[0].mxu0
  %1903 = vdwg.mxu0
  %v1904 = vmax.f32 %v1606, 0.0
  %v1905 = vmax.f32 %v1608, 0.0
  %v1906 = vmax.f32 %v1874, 0.0
  %v1907 = vmax.f32 %v1610, 0.0
  %v1908 = vmax.f32 %v1612, 0.0
  %v1909 = vmax.f32 %v1877, 0.0
  %v1910 = vmax.f32 %v1616, 0.0
  %v1911 = vmax.f32 %v1618, 0.0
  %v1912 = vmax.f32 %v1882, 0.0
  %v1913 = vmax.f32 %v1620, 0.0
  %v1914 = vmax.f32 %v1622, 0.0
  %v1915 = vmax.f32 %v1885, 0.0
  %v1916 = vmax.f32 %v1626, 0.0
  %v1917 = vmax.f32 %v1628, 0.0
  %v1918 = vmax.f32 %v1890, 0.0
  %v1919 = vmax.f32 %v1630, 0.0
  %v1920 = vmax.f32 %v1632, 0.0
  %v1921 = vmax.f32 %v1893, 0.0
  %v1922 = vmax.f32 %v1636, 0.0
  %v1923 = vmax.f32 %v1638, 0.0
  %v1924 = vmax.f32 %v1898, 0.0
  %v1925 = vmax.f32 %v1640, 0.0
  %v1926 = vmax.f32 %v1642, 0.0
  %v1927 = vmax.f32 %v1901, 0.0
  %v1928 = vld [vmem:[%s3] sm:$0x7]
  %v1929 = vld [vmem:[%s4] sm:$0x7]
  %v1930 = vadd.f32 %v1904, %v1907
  %v1931 = vadd.f32 %v1930, %v1910
  %v1932 = vadd.f32 %v1931, %v1913
  %v1933 = vadd.f32 %v1932, %v1916
  %v1934 = vadd.f32 %v1933, %v1919
  %v1935 = vadd.f32 %v1934, %v1922
  %v1936 = vadd.f32 %v1935, %v1925
  %v1937 = vrot.slane %v1936, 4
  %v1938 = vadd.f32 %v1936, %v1937
  %v1939 = vrot.slane %v1938, 2
  %v1940 = vadd.f32 %v1938, %v1939
  %v1941 = vrot.slane %v1940, 1
  %v1942 = vadd.f32 %v1940, %v1941
  %v1943 = vadd.f32 %v1905, %v1908
  %v1944 = vadd.f32 %v1943, %v1911
  %v1945 = vadd.f32 %v1944, %v1914
  %v1946 = vadd.f32 %v1945, %v1917
  %v1947 = vadd.f32 %v1946, %v1920
  %v1948 = vadd.f32 %v1947, %v1923
  %v1949 = vadd.f32 %v1948, %v1926
  %v1950 = vrot.slane %v1949, 4
  %v1951 = vadd.f32 %v1949, %v1950
  %v1952 = vrot.slane %v1951, 2
  %v1953 = vadd.f32 %v1951, %v1952
  %v1954 = vrot.slane %v1953, 1
  %v1955 = vadd.f32 %v1953, %v1954
  %v1956 = vadd.f32 %v1906, %v1909
  %v1957 = vadd.f32 %v1956, %v1912
  %v1958 = vadd.f32 %v1957, %v1915
  %v1959 = vadd.f32 %v1958, %v1918
  %v1960 = vadd.f32 %v1959, %v1921
  %v1961 = vadd.f32 %v1960, %v1924
  %v1962 = vadd.f32 %v1961, %v1927
  %v1963 = vrot.slane %v1962, 4
  %v1964 = vadd.f32 %v1962, %v1963
  %v1965 = vrot.slane %v1964, 2
  %v1966 = vadd.f32 %v1964, %v1965
  %v1967 = vrot.slane %v1966, 1
  %v1968 = vadd.f32 %v1966, %v1967
  %v1969 = vmul.f32 %v1904, %v1904
  %v1970 = vmul.f32 %v1905, %v1905
  %v1971 = vmul.f32 %v1906, %v1906
  %v1972 = vmul.f32 %v1907, %v1907
  %v1973 = vmul.f32 %v1908, %v1908
  %v1974 = vmul.f32 %v1909, %v1909
  %v1975 = vmul.f32 %v1910, %v1910
  %v1976 = vmul.f32 %v1911, %v1911
  %v1977 = vmul.f32 %v1912, %v1912
  %v1978 = vmul.f32 %v1913, %v1913
  %v1979 = vmul.f32 %v1914, %v1914
  %v1980 = vmul.f32 %v1915, %v1915
  %v1981 = vmul.f32 %v1916, %v1916
  %v1982 = vmul.f32 %v1917, %v1917
  %v1983 = vmul.f32 %v1918, %v1918
  %v1984 = vmul.f32 %v1919, %v1919
  %v1985 = vmul.f32 %v1920, %v1920
  %v1986 = vmul.f32 %v1921, %v1921
  %v1987 = vmul.f32 %v1922, %v1922
  %v1988 = vmul.f32 %v1923, %v1923
  %v1989 = vmul.f32 %v1924, %v1924
  %v1990 = vmul.f32 %v1925, %v1925
  %v1991 = vmul.f32 %v1926, %v1926
  %v1992 = vmul.f32 %v1927, %v1927
  %v1993 = vadd.f32 %v1969, %v1972
  %v1994 = vadd.f32 %v1993, %v1975
  %v1995 = vadd.f32 %v1994, %v1978
  %v1996 = vadd.f32 %v1995, %v1981
  %v1997 = vadd.f32 %v1996, %v1984
  %v1998 = vadd.f32 %v1997, %v1987
  %v1999 = vadd.f32 %v1998, %v1990
  %v2000 = vrot.slane %v1999, 4
  %v2001 = vadd.f32 %v1999, %v2000
  %v2002 = vrot.slane %v2001, 2
  %v2003 = vadd.f32 %v2001, %v2002
  %v2004 = vrot.slane %v2003, 1
  %v2005 = vadd.f32 %v2003, %v2004
  %v2006 = vadd.f32 %v1970, %v1973
  %v2007 = vadd.f32 %v2006, %v1976
  %v2008 = vadd.f32 %v2007, %v1979
  %v2009 = vadd.f32 %v2008, %v1982
  %v2010 = vadd.f32 %v2009, %v1985
  %v2011 = vadd.f32 %v2010, %v1988
  %v2012 = vadd.f32 %v2011, %v1991
  %v2013 = vrot.slane %v2012, 4
  %v2014 = vadd.f32 %v2012, %v2013
  %v2015 = vrot.slane %v2014, 2
  %v2016 = vadd.f32 %v2014, %v2015
  %v2017 = vrot.slane %v2016, 1
  %v2018 = vadd.f32 %v2016, %v2017
  %v2019 = vadd.f32 %v1971, %v1974
  %v2020 = vadd.f32 %v2019, %v1977
  %v2021 = vadd.f32 %v2020, %v1980
  %v2022 = vadd.f32 %v2021, %v1983
  %v2023 = vadd.f32 %v2022, %v1986
  %v2024 = vadd.f32 %v2023, %v1989
  %v2025 = vadd.f32 %v2024, %v1992
  %v2026 = vrot.slane %v2025, 4
  %v2027 = vadd.f32 %v2025, %v2026
  %v2028 = vrot.slane %v2027, 2
  %v2029 = vadd.f32 %v2027, %v2028
  %v2030 = vrot.slane %v2029, 1
  %v2031 = vadd.f32 %v2029, %v2030
  %v2032 = vmul.f32 %v1942, 0.015625
  %v2033 = vmul.f32 %v1955, 0.015625
  %v2034 = vmul.f32 %v1968, 0.015625
  %v2035 = vmul.f32 %v2005, 0.015625
  %v2036 = vmul.f32 %v2018, 0.015625
  %v2037 = vmul.f32 %v2031, 0.015625
  %v2038 = vmul.f32 %v2032, %v2032
  %v2039 = vmul.f32 %v2033, %v2033
  %v2040 = vmul.f32 %v2034, %v2034
  %v2041 = vsub.f32 %v2035, %v2038
  %v2042 = vsub.f32 %v2036, %v2039
  %v2043 = vsub.f32 %v2037, %v2040
  %v2044 = vmax.f32 %v2041, 0.0
  %v2045 = vmax.f32 %v2042, 0.0
  %v2046 = vmax.f32 %v2043, 0.0
  %v2047 = vadd.f32 %v2044, 1e-05
  %v2048 = vadd.f32 %v2045, 1e-05
  %v2049 = vadd.f32 %v2046, 1e-05
  %v2050 = vrsqrt.pop %v2047
  %v2051 = vrsqrt.pop %v2048
  %v2052 = vrsqrt.pop %v2049
  %v2056 = vcombine.low %v2050, %v2051
  %v2058 = vunpack.c.l.s4 1966171168
  %v2059 = vunpack.c.0.s8 %v2058
  %v2060 = vlaneseq
  %v2061 = vshrl.u32 %v2060, 7
  %v2062 = vsub.s32 %v2059, %v2061
  %v2063 = vrot.slane %v2056, %v2062
  %v2065 = vunpack.c.l.s4 1966171168
  %v2066 = vunpack.c.0.s8 %v2065
  %v2067 = vlaneseq
  %v2068 = vshrl.u32 %v2067, 7
  %v2069 = vsub.s32 %v2066, %v2068
  %v2070 = vrot.slane %v2052, %v2069
  %v2071 = vcombine.low %v2063, %v2070
  %v2073 = vunpack.c.l.s4 1966171168
  %v2074 = vunpack.c.0.s8 %v2073
  %v2075 = vlaneseq
  %v2076 = vshrl.u32 %v2075, 7
  %v2077 = vsub.s32 %v2074, %v2076
  %v2078 = vrot.slane %v2071, %v2077
  %v2080 = vmul.f32 %v1928, %v2078
  %v2082 = vlaneseq
  %v2083 = vshrl.u32 %v2082, 7
  %v2084 = vsub.s32 0, %v2083
  %v2085 = vrot.slane %v2080, %v2084
  %v2086 = vlaneseq
  %v2087 = vshrl.u32 %v2086, 7
  %v2088 = vsub.s32 1, %v2087
  %v2089 = vrot.slane %v2080, %v2088
  %v2090 = vlaneseq
  %v2091 = vshrl.u32 %v2090, 7
  %v2092 = vsub.s32 2, %v2091
  %v2093 = vrot.slane %v2080, %v2092
  %v2097 = vmul.f32 %v2032, %v2085
  %v2098 = vmul.f32 %v2033, %v2089
  %v2099 = vmul.f32 %v2034, %v2093
  %v2103 = vcombine.low %v2097, %v2098
  %v2105 = vunpack.c.l.s4 1966171168
  %v2106 = vunpack.c.0.s8 %v2105
  %v2107 = vlaneseq
  %v2108 = vshrl.u32 %v2107, 7
  %v2109 = vsub.s32 %v2106, %v2108
  %v2110 = vrot.slane %v2103, %v2109
  %v2112 = vunpack.c.l.s4 1966171168
  %v2113 = vunpack.c.0.s8 %v2112
  %v2114 = vlaneseq
  %v2115 = vshrl.u32 %v2114, 7
  %v2116 = vsub.s32 %v2113, %v2115
  %v2117 = vrot.slane %v2099, %v2116
  %v2118 = vcombine.low %v2110, %v2117
  %v2120 = vunpack.c.l.s4 1966171168
  %v2121 = vunpack.c.0.s8 %v2120
  %v2122 = vlaneseq
  %v2123 = vshrl.u32 %v2122, 7
  %v2124 = vsub.s32 %v2121, %v2123
  %v2125 = vrot.slane %v2118, %v2124
  %v2127 = vsub.f32 %v1929, %v2125
  %v2128 = vmul.f32 %v1904, %v2085
  %v2129 = vmul.f32 %v1905, %v2089
  %v2130 = vmul.f32 %v1906, %v2093
  %v2131 = vmul.f32 %v1907, %v2085
  %v2132 = vmul.f32 %v1908, %v2089
  %v2133 = vmul.f32 %v1909, %v2093
  %v2134 = vmul.f32 %v1910, %v2085
  %v2135 = vmul.f32 %v1911, %v2089
  %v2136 = vmul.f32 %v1912, %v2093
  %v2137 = vmul.f32 %v1913, %v2085
  %v2138 = vmul.f32 %v1914, %v2089
  %v2139 = vmul.f32 %v1915, %v2093
  %v2140 = vmul.f32 %v1916, %v2085
  %v2141 = vmul.f32 %v1917, %v2089
  %v2142 = vmul.f32 %v1918, %v2093
  %v2143 = vmul.f32 %v1919, %v2085
  %v2144 = vmul.f32 %v1920, %v2089
  %v2145 = vmul.f32 %v1921, %v2093
  %v2146 = vmul.f32 %v1922, %v2085
  %v2147 = vmul.f32 %v1923, %v2089
  %v2148 = vmul.f32 %v1924, %v2093
  %v2149 = vmul.f32 %v1925, %v2085
  %v2150 = vmul.f32 %v1926, %v2089
  %v2151 = vmul.f32 %v1927, %v2093
  %v2153 = vlaneseq
  %v2154 = vshrl.u32 %v2153, 7
  %v2155 = vsub.s32 0, %v2154
  %v2156 = vrot.slane %v2127, %v2155
  %v2157 = vlaneseq
  %v2158 = vshrl.u32 %v2157, 7
  %v2159 = vsub.s32 1, %v2158
  %v2160 = vrot.slane %v2127, %v2159
  %v2161 = vlaneseq
  %v2162 = vshrl.u32 %v2161, 7
  %v2163 = vsub.s32 2, %v2162
  %v2164 = vrot.slane %v2127, %v2163
  %v2168 = vadd.f32 %v2128, %v2156
  %v2169 = vadd.f32 %v2129, %v2160
  %v2170 = vadd.f32 %v2130, %v2164
  %v2171 = vadd.f32 %v2131, %v2156
  %v2172 = vadd.f32 %v2132, %v2160
  %v2173 = vadd.f32 %v2133, %v2164
  %v2174 = vadd.f32 %v2134, %v2156
  %v2175 = vadd.f32 %v2135, %v2160
  %v2176 = vadd.f32 %v2136, %v2164
  %v2177 = vadd.f32 %v2137, %v2156
  %v2178 = vadd.f32 %v2138, %v2160
  %v2179 = vadd.f32 %v2139, %v2164
  %v2180 = vadd.f32 %v2140, %v2156
  %v2181 = vadd.f32 %v2141, %v2160
  %v2182 = vadd.f32 %v2142, %v2164
  %v2183 = vadd.f32 %v2143, %v2156
  %v2184 = vadd.f32 %v2144, %v2160
  %v2185 = vadd.f32 %v2145, %v2164
  %v2186 = vadd.f32 %v2146, %v2156
  %v2187 = vadd.f32 %v2147, %v2160
  %v2188 = vadd.f32 %v2148, %v2164
  %v2189 = vadd.f32 %v2149, %v2156
  %v2190 = vadd.f32 %v2150, %v2160
  %v2191 = vadd.f32 %v2151, %v2164
  %v2192 = vpack.c.bf16 %v2171, %v2168
  %v2193 = vpack.c.bf16 %v2172, %v2169
  %v2194 = vpack.c.bf16 %v2173, %v2170
  %v2195 = vpack.c.bf16 %v2177, %v2174
  %v2196 = vpack.c.bf16 %v2178, %v2175
  %v2197 = vpack.c.bf16 %v2179, %v2176
  %v2198 = vpack.c.bf16 %v2183, %v2180
  %v2199 = vpack.c.bf16 %v2184, %v2181
  %v2200 = vpack.c.bf16 %v2185, %v2182
  %v2201 = vpack.c.bf16 %v2189, %v2186
  %v2202 = vpack.c.bf16 %v2190, %v2187
  %v2203 = vpack.c.bf16 %v2191, %v2188
  %v2204 = vld [vmem:[%s5] sm:$0xf]
  %v2205 = vld [vmem:[%s5 + $0x4] sm:$0xf]
  %v2206 = vld [vmem:[%s5 + $0x8] sm:$0xf]
  %v2207 = vld [vmem:[%s5 + $0xc] sm:$0xf]
  %v2208 = vld [vmem:[%s5 + $0x10] sm:$0xf]
  %v2209 = vld [vmem:[%s5 + $0x14] sm:$0xf]
  %v2210 = vld [vmem:[%s5 + $0x18] sm:$0xf]
  %v2211 = vld [vmem:[%s5 + $0x1c] sm:$0xf]
  %v2212 = vld [vmem:[%s5 + $0x20] sm:$0xf]
  %v2213 = vld [vmem:[%s5 + $0x24] sm:$0xf]
  %v2214 = vld [vmem:[%s5 + $0x28] sm:$0xf]
  %v2215 = vld [vmem:[%s5 + $0x2c] sm:$0xf]
  %v2216 = vld [vmem:[%s5 + $0x30] sm:$0xf]
  %v2217 = vld [vmem:[%s5 + $0x34] sm:$0xf]
  %v2218 = vld [vmem:[%s5 + $0x38] sm:$0xf]
  %v2219 = vld [vmem:[%s5 + $0x3c] sm:$0xf]
  %v2220 = vld [vmem:[%s5 + $0x40] sm:$0xf]
  %v2221 = vld [vmem:[%s5 + $0x44] sm:$0xf]
  %v2222 = vld [vmem:[%s5 + $0x48] sm:$0xf]
  %v2223 = vld [vmem:[%s5 + $0x4c] sm:$0xf]
  %v2224 = vld [vmem:[%s5 + $0x50] sm:$0xf]
  %v2225 = vld [vmem:[%s5 + $0x54] sm:$0xf]
  %v2226 = vld [vmem:[%s5 + $0x58] sm:$0xf]
  %v2227 = vld [vmem:[%s5 + $0x5c] sm:$0xf]
  %v2228 = vld [vmem:[%s5 + $0x60] sm:$0xf]
  %v2229 = vld [vmem:[%s5 + $0x64] sm:$0xf]
  %v2230 = vld [vmem:[%s5 + $0x68] sm:$0xf]
  %v2231 = vld [vmem:[%s5 + $0x6c] sm:$0xf]
  %v2232 = vld [vmem:[%s5 + $0x70] sm:$0xf]
  %v2233 = vld [vmem:[%s5 + $0x74] sm:$0xf]
  %v2234 = vld [vmem:[%s5 + $0x78] sm:$0xf]
  %v2235 = vld [vmem:[%s5 + $0x7c] sm:$0xf]
  %v2236 = vld [vmem:[%s5 + $0x80] sm:$0xf]
  %v2237 = vld [vmem:[%s5 + $0x84] sm:$0xf]
  %v2238 = vld [vmem:[%s5 + $0x88] sm:$0xf]
  %v2239 = vld [vmem:[%s5 + $0x8c] sm:$0xf]
  %v2240 = vld [vmem:[%s5 + $0x90] sm:$0xf]
  %v2241 = vld [vmem:[%s5 + $0x94] sm:$0xf]
  %v2242 = vld [vmem:[%s5 + $0x98] sm:$0xf]
  %v2243 = vld [vmem:[%s5 + $0x9c] sm:$0xf]
  %v2244 = vld [vmem:[%s5 + $0xa0] sm:$0xf]
  %v2245 = vld [vmem:[%s5 + $0xa4] sm:$0xf]
  %v2246 = vld [vmem:[%s5 + $0xa8] sm:$0xf]
  %v2247 = vld [vmem:[%s5 + $0xac] sm:$0xf]
  %v2248 = vld [vmem:[%s5 + $0xb0] sm:$0xf]
  %v2249 = vld [vmem:[%s5 + $0xb4] sm:$0xf]
  %v2250 = vld [vmem:[%s5 + $0xb8] sm:$0xf]
  %v2251 = vld [vmem:[%s5 + $0xbc] sm:$0xf]
  %v2252 = vld [vmem:[%s6] sm:$0x1]
  %v2254 = vlaneseq
  %v2255 = vshrl.u32 %v2254, 7
  %v2256 = vsub.s32 0, %v2255
  %v2257 = vrot.slane %v2252, %v2256
  %v2307 = vunpack.c.l.b16 %v2204
  %v2308 = vunpack.c.l.b16 %v2205
  %v2309 = vunpack.c.l.b16 %v2206
  %v2310 = vunpack.c.l.b16 %v2207
  %v2311 = vunpack.c.l.b16 %v2208
  %v2312 = vunpack.c.l.b16 %v2209
  %v2313 = vunpack.c.l.b16 %v2210
  %v2314 = vunpack.c.l.b16 %v2211
  %v2315 = vunpack.c.l.b16 %v2212
  %v2316 = vunpack.c.l.b16 %v2213
  %v2317 = vunpack.c.l.b16 %v2214
  %v2318 = vunpack.c.l.b16 %v2215
  %v2319 = vunpack.c.l.b16 %v2216
  %v2320 = vunpack.c.l.b16 %v2217
  %v2321 = vunpack.c.l.b16 %v2218
  %v2322 = vunpack.c.l.b16 %v2219
  %v2323 = vunpack.c.l.b16 %v2220
  %v2324 = vunpack.c.l.b16 %v2221
  %v2325 = vunpack.c.l.b16 %v2222
  %v2326 = vunpack.c.l.b16 %v2223
  %v2327 = vunpack.c.l.b16 %v2224
  %v2328 = vunpack.c.l.b16 %v2225
  %v2329 = vunpack.c.l.b16 %v2226
  %v2330 = vunpack.c.l.b16 %v2227
  %v2331 = vunpack.c.l.b16 %v2228
  %v2332 = vunpack.c.l.b16 %v2229
  %v2333 = vunpack.c.l.b16 %v2230
  %v2334 = vunpack.c.l.b16 %v2231
  %v2335 = vunpack.c.l.b16 %v2232
  %v2336 = vunpack.c.l.b16 %v2233
  %v2337 = vunpack.c.l.b16 %v2234
  %v2338 = vunpack.c.l.b16 %v2235
  %v2339 = vunpack.c.l.b16 %v2236
  %v2340 = vunpack.c.l.b16 %v2237
  %v2341 = vunpack.c.l.b16 %v2238
  %v2342 = vunpack.c.l.b16 %v2239
  %v2343 = vunpack.c.l.b16 %v2240
  %v2344 = vunpack.c.l.b16 %v2241
  %v2345 = vunpack.c.l.b16 %v2242
  %v2346 = vunpack.c.l.b16 %v2243
  %v2347 = vunpack.c.l.b16 %v2244
  %v2348 = vunpack.c.l.b16 %v2245
  %v2349 = vunpack.c.l.b16 %v2246
  %v2350 = vunpack.c.l.b16 %v2247
  %v2351 = vunpack.c.l.b16 %v2248
  %v2352 = vunpack.c.l.b16 %v2249
  %v2353 = vunpack.c.l.b16 %v2250
  %v2354 = vunpack.c.l.b16 %v2251
  %v2355 = vpack.c.b16 %v2308, %v2307
  %v2356 = vpack.c.b16 %v2310, %v2309
  %v2357 = vpack.c.b16 %v2312, %v2311
  %v2358 = vpack.c.b16 %v2314, %v2313
  %v2359 = vpack.c.b16 %v2316, %v2315
  %v2360 = vpack.c.b16 %v2318, %v2317
  %v2361 = vpack.c.b16 %v2320, %v2319
  %v2362 = vpack.c.b16 %v2322, %v2321
  %v2363 = vpack.c.b16 %v2324, %v2323
  %v2364 = vpack.c.b16 %v2326, %v2325
  %v2365 = vpack.c.b16 %v2328, %v2327
  %v2366 = vpack.c.b16 %v2330, %v2329
  %v2367 = vpack.c.b16 %v2332, %v2331
  %v2368 = vpack.c.b16 %v2334, %v2333
  %v2369 = vpack.c.b16 %v2336, %v2335
  %v2370 = vpack.c.b16 %v2338, %v2337
  %v2371 = vpack.c.b16 %v2340, %v2339
  %v2372 = vpack.c.b16 %v2342, %v2341
  %v2373 = vpack.c.b16 %v2344, %v2343
  %v2374 = vpack.c.b16 %v2346, %v2345
  %v2375 = vpack.c.b16 %v2348, %v2347
  %v2376 = vpack.c.b16 %v2350, %v2349
  %v2377 = vpack.c.b16 %v2352, %v2351
  %v2378 = vpack.c.b16 %v2354, %v2353
  %2403 = vmatprep.subr.bf16.mxu0 0
  %2404 = vmatpush1.bf16.msra.mxu0 %v2355
  %2405 = vmatprep.subr.bf16.mxu0 0
  %2406 = vmatpush1.bf16.msra.mxu0 %v2356
  %2407 = vmatprep.subr.bf16.mxu0 0
  %2408 = vmatpush1.bf16.msra.mxu0 %v2357
  %2409 = vmatprep.subr.bf16.mxu0 0
  %2410 = vmatpush1.bf16.msra.mxu0 %v2358
  %2411 = vmatprep.subr.bf16.mxu0 0
  %2412 = vmatpush1.bf16.msra.mxu0 %v2359
  %2413 = vmatprep.subr.bf16.mxu0 0
  %2414 = vmatpush1.bf16.msra.mxu0 %v2360
  %2415 = vmatprep.subr.bf16.mxu0 0
  %2416 = vmatpush1.bf16.msra.mxu0 %v2361
  %2417 = vmatprep.subr.bf16.mxu0 0
  %2418 = vmatpush1.bf16.msra.mxu0 %v2362
  %2419 = vmatprep.subr.bf16.mxu0 0
  %2420 = vmatpush1.bf16.msra.mxu0 %v2363
  %2421 = vmatprep.subr.bf16.mxu0 0
  %2422 = vmatpush1.bf16.msra.mxu0 %v2364
  %2423 = vmatprep.subr.bf16.mxu0 0
  %2424 = vmatpush1.bf16.msra.mxu0 %v2365
  %2425 = vmatprep.subr.bf16.mxu0 0
  %2426 = vmatpush1.bf16.msra.mxu0 %v2366
  %2427 = vmatprep.subr.bf16.mxu0 0
  %2428 = vmatpush1.bf16.msra.mxu0 %v2367
  %2429 = vmatprep.subr.bf16.mxu0 0
  %2430 = vmatpush1.bf16.msra.mxu0 %v2368
  %2431 = vmatprep.subr.bf16.mxu0 0
  %2432 = vmatpush1.bf16.msra.mxu0 %v2369
  %2433 = vmatprep.subr.bf16.mxu0 0
  %2434 = vmatpush1.bf16.msra.mxu0 %v2370
  %2435 = vmatprep.mubr.bf16.mxu0 %v2193
  %2436 = vmatmul.mubr.bf16.gmra.mrb[0].mxu0 %v2192
  %v2437 = vpop.f32.mrb[0].mxu0
  %v2438 = vadd.f32 %v2257, %v2437
  %v2439 = vpop.f32.mrb[0].mxu0
  %v2440 = vpop.f32.mrb[0].mxu0
  %v2441 = vadd.f32 %v2257, %v2440
  %v2442 = vpop.f32.mrb[0].mxu0
  %2443 = vmatprep.mubr.bf16.mxu0 %v2196
  %2444 = vmatmul.mubr.bf16.gmra.mrb[0].mxu0 %v2195
  %v2445 = vpop.f32.mrb[0].mxu0
  %v2446 = vadd.f32 %v2257, %v2445
  %v2447 = vpop.f32.mrb[0].mxu0
  %v2448 = vpop.f32.mrb[0].mxu0
  %v2449 = vadd.f32 %v2257, %v2448
  %v2450 = vpop.f32.mrb[0].mxu0
  %2451 = vmatprep.mubr.bf16.mxu0 %v2199
  %2452 = vmatmul.mubr.bf16.gmra.mrb[0].mxu0 %v2198
  %v2453 = vpop.f32.mrb[0].mxu0
  %v2454 = vadd.f32 %v2257, %v2453
  %v2455 = vpop.f32.mrb[0].mxu0
  %v2456 = vpop.f32.mrb[0].mxu0
  %v2457 = vadd.f32 %v2257, %v2456
  %v2458 = vpop.f32.mrb[0].mxu0
  %2459 = vmatprep.mubr.bf16.mxu0 %v2202
  %2460 = vmatmul.mubr.bf16.gmra.mrb[0].mxu0 %v2201
  %v2461 = vpop.f32.mrb[0].mxu0
  %v2462 = vadd.f32 %v2257, %v2461
  %v2463 = vpop.f32.mrb[0].mxu0
  %v2464 = vpop.f32.mrb[0].mxu0
  %v2465 = vadd.f32 %v2257, %v2464
  %v2466 = vpop.f32.mrb[0].mxu0
  %2467 = vdwg.mxu0
  %2468 = vmatprep.subr.bf16.mxu0 0
  %2469 = vmatpush1.bf16.msra.mxu0 %v2371
  %2470 = vmatprep.subr.bf16.mxu0 0
  %2471 = vmatpush1.bf16.msra.mxu0 %v2372
  %2472 = vmatprep.subr.bf16.mxu0 0
  %2473 = vmatpush1.bf16.msra.mxu0 %v2373
  %2474 = vmatprep.subr.bf16.mxu0 0
  %2475 = vmatpush1.bf16.msra.mxu0 %v2374
  %2476 = vmatprep.subr.bf16.mxu0 0
  %2477 = vmatpush1.bf16.msra.mxu0 %v2375
  %2478 = vmatprep.subr.bf16.mxu0 0
  %2479 = vmatpush1.bf16.msra.mxu0 %v2376
  %2480 = vmatprep.subr.bf16.mxu0 0
  %2481 = vmatpush1.bf16.msra.mxu0 %v2377
  %2482 = vmatprep.subr.bf16.mxu0 0
  %2483 = vmatpush1.bf16.msra.mxu0 %v2378
  %2484 = vmatprep.subr.bf16.mxu0 0
  %2485 = vmatpush1.bf16.msra.mxu0 0
  %2486 = vmatprep.subr.bf16.mxu0 0
  %2487 = vmatpush1.bf16.msra.mxu0 0
  %2488 = vmatprep.subr.bf16.mxu0 0
  %2489 = vmatpush1.bf16.msra.mxu0 0
  %2490 = vmatprep.subr.bf16.mxu0 0
  %2491 = vmatpush1.bf16.msra.mxu0 0
  %2492 = vmatprep.subr.bf16.mxu0 0
  %2493 = vmatpush1.bf16.msra.mxu0 0
  %2494 = vmatprep.subr.bf16.mxu0 0
  %2495 = vmatpush1.bf16.msra.mxu0 0
  %2496 = vmatprep.subr.bf16.mxu0 0
  %2497 = vmatpush1.bf16.msra.mxu0 0
  %2498 = vmatprep.subr.bf16.mxu0 0
  %2499 = vmatpush1.bf16.msra.mxu0 0
  %2500 = vmatprep.mubr.bf16.mxu0 0
  %2501 = vmatmul.mubr.bf16.gmra.mrb[0].mxu0 %v2194
  %v2502 = vpop.f32.mrb[0].mxu0
  %v2503 = vadd.f32 %v2438, %v2502
  %v2504 = vpop.f32.mrb[0].mxu0
  %v2505 = vpop.f32.mrb[0].mxu0
  %v2506 = vadd.f32 %v2441, %v2505
  %v2507 = vpop.f32.mrb[0].mxu0
  %2508 = vmatprep.mubr.bf16.mxu0 0
  %2509 = vmatmul.mubr.bf16.gmra.mrb[0].mxu0 %v2197
  %v2510 = vpop.f32.mrb[0].mxu0
  %v2511 = vadd.f32 %v2446, %v2510
  %v2512 = vpop.f32.mrb[0].mxu0
  %v2513 = vpop.f32.mrb[0].mxu0
  %v2514 = vadd.f32 %v2449, %v2513
  %v2515 = vpop.f32.mrb[0].mxu0
  %2516 = vmatprep.mubr.bf16.mxu0 0
  %2517 = vmatmul.mubr.bf16.gmra.mrb[0].mxu0 %v2200
  %v2518 = vpop.f32.mrb[0].mxu0
  %v2519 = vadd.f32 %v2454, %v2518
  %v2520 = vpop.f32.mrb[0].mxu0
  %v2521 = vpop.f32.mrb[0].mxu0
  %v2522 = vadd.f32 %v2457, %v2521
  %v2523 = vpop.f32.mrb[0].mxu0
  %2524 = vmatprep.mubr.bf16.mxu0 0
  %2525 = vmatmul.mubr.bf16.gmra.mrb[0].mxu0 %v2203
  %v2526 = vpop.f32.mrb[0].mxu0
  %v2527 = vadd.f32 %v2462, %v2526
  %v2528 = vpop.f32.mrb[0].mxu0
  %v2529 = vpop.f32.mrb[0].mxu0
  %v2530 = vadd.f32 %v2465, %v2529
  %v2531 = vpop.f32.mrb[0].mxu0
  %2532 = vdwg.mxu0
  %v2533 = vmax.f32 %v2503, 0.0
  %v2534 = vmax.f32 %v2506, 0.0
  %v2535 = vmax.f32 %v2511, 0.0
  %v2536 = vmax.f32 %v2514, 0.0
  %v2537 = vmax.f32 %v2519, 0.0
  %v2538 = vmax.f32 %v2522, 0.0
  %v2539 = vmax.f32 %v2527, 0.0
  %v2540 = vmax.f32 %v2530, 0.0
  %v2541 = vld [vmem:[%s7] sm:$0x1]
  %v2542 = vld [vmem:[%s8] sm:$0x1]
  %v2543 = vadd.f32 %v2533, %v2534
  %v2544 = vadd.f32 %v2543, %v2535
  %v2545 = vadd.f32 %v2544, %v2536
  %v2546 = vadd.f32 %v2545, %v2537
  %v2547 = vadd.f32 %v2546, %v2538
  %v2548 = vadd.f32 %v2547, %v2539
  %v2549 = vadd.f32 %v2548, %v2540
  %v2550 = vrot.slane %v2549, 4
  %v2551 = vadd.f32 %v2549, %v2550
  %v2552 = vrot.slane %v2551, 2
  %v2553 = vadd.f32 %v2551, %v2552
  %v2554 = vrot.slane %v2553, 1
  %v2555 = vadd.f32 %v2553, %v2554
  %v2556 = vmul.f32 %v2533, %v2533
  %v2557 = vmul.f32 %v2534, %v2534
  %v2558 = vmul.f32 %v2535, %v2535
  %v2559 = vmul.f32 %v2536, %v2536
  %v2560 = vmul.f32 %v2537, %v2537
  %v2561 = vmul.f32 %v2538, %v2538
  %v2562 = vmul.f32 %v2539, %v2539
  %v2563 = vmul.f32 %v2540, %v2540
  %v2564 = vadd.f32 %v2556, %v2557
  %v2565 = vadd.f32 %v2564, %v2558
  %v2566 = vadd.f32 %v2565, %v2559
  %v2567 = vadd.f32 %v2566, %v2560
  %v2568 = vadd.f32 %v2567, %v2561
  %v2569 = vadd.f32 %v2568, %v2562
  %v2570 = vadd.f32 %v2569, %v2563
  %v2571 = vrot.slane %v2570, 4
  %v2572 = vadd.f32 %v2570, %v2571
  %v2573 = vrot.slane %v2572, 2
  %v2574 = vadd.f32 %v2572, %v2573
  %v2575 = vrot.slane %v2574, 1
  %v2576 = vadd.f32 %v2574, %v2575
  %v2577 = vmul.f32 %v2555, 0.015625
  %v2578 = vmul.f32 %v2576, 0.015625
  %v2579 = vmul.f32 %v2577, %v2577
  %v2580 = vsub.f32 %v2578, %v2579
  %v2581 = vmax.f32 %v2580, 0.0
  %v2582 = vadd.f32 %v2581, 1e-05
  %v2583 = vrsqrt.pop %v2582
  %v2584 = vmul.f32 %v2541, %v2583
  %v2585 = vmul.f32 %v2577, %v2584
  %v2586 = vsub.f32 %v2542, %v2585
  %v2588 = vlaneseq
  %v2589 = vshrl.u32 %v2588, 7
  %v2590 = vsub.s32 0, %v2589
  %v2591 = vrot.slane %v2584, %v2590
  %v2593 = vmul.f32 %v2533, %v2591
  %v2594 = vmul.f32 %v2534, %v2591
  %v2595 = vmul.f32 %v2535, %v2591
  %v2596 = vmul.f32 %v2536, %v2591
  %v2597 = vmul.f32 %v2537, %v2591
  %v2598 = vmul.f32 %v2538, %v2591
  %v2599 = vmul.f32 %v2539, %v2591
  %v2600 = vmul.f32 %v2540, %v2591
  %v2602 = vlaneseq
  %v2603 = vshrl.u32 %v2602, 7
  %v2604 = vsub.s32 0, %v2603
  %v2605 = vrot.slane %v2586, %v2604
  %v2607 = vadd.f32 %v2593, %v2605
  %v2608 = vadd.f32 %v2594, %v2605
  %v2609 = vadd.f32 %v2595, %v2605
  %v2610 = vadd.f32 %v2596, %v2605
  %v2611 = vadd.f32 %v2597, %v2605
  %v2612 = vadd.f32 %v2598, %v2605
  %v2613 = vadd.f32 %v2599, %v2605
  %v2614 = vadd.f32 %v2600, %v2605
  %v2615 = vpack.c.bf16 %v2608, %v2607
  %v2616 = vpack.c.bf16 %v2610, %v2609
  %v2617 = vpack.c.bf16 %v2612, %v2611
  %v2618 = vpack.c.bf16 %v2614, %v2613
  %v2619 = vld [vmem:[%s9] sm:$0xf]
  %v2620 = vld [vmem:[%s9 + $0x4] sm:$0xf]
  %v2621 = vld [vmem:[%s9 + $0x8] sm:$0xf]
  %v2622 = vld [vmem:[%s9 + $0xc] sm:$0xf]
  %v2623 = vld [vmem:[%s9 + $0x10] sm:$0xf]
  %v2624 = vld [vmem:[%s9 + $0x14] sm:$0xf]
  %v2625 = vld [vmem:[%s9 + $0x18] sm:$0xf]
  %v2626 = vld [vmem:[%s9 + $0x1c] sm:$0xf]
  %v2627 = vld [vmem:[%s9 + $0x20] sm:$0xf]
  %v2628 = vld [vmem:[%s9 + $0x24] sm:$0xf]
  %v2629 = vld [vmem:[%s9 + $0x28] sm:$0xf]
  %v2630 = vld [vmem:[%s9 + $0x2c] sm:$0xf]
  %v2631 = vld [vmem:[%s9 + $0x30] sm:$0xf]
  %v2632 = vld [vmem:[%s9 + $0x34] sm:$0xf]
  %v2633 = vld [vmem:[%s9 + $0x38] sm:$0xf]
  %v2634 = vld [vmem:[%s9 + $0x3c] sm:$0xf]
  %v2635 = vld [vmem:[%s10] sm:$0x1]
  %v2637 = vlaneseq
  %v2638 = vshrl.u32 %v2637, 7
  %v2639 = vsub.s32 0, %v2638
  %v2640 = vrot.slane %v2635, %v2639
  %v2658 = vunpack.c.l.b16 %v2619
  %v2659 = vunpack.c.l.b16 %v2620
  %v2660 = vunpack.c.l.b16 %v2621
  %v2661 = vunpack.c.l.b16 %v2622
  %v2662 = vunpack.c.l.b16 %v2623
  %v2663 = vunpack.c.l.b16 %v2624
  %v2664 = vunpack.c.l.b16 %v2625
  %v2665 = vunpack.c.l.b16 %v2626
  %v2666 = vunpack.c.l.b16 %v2627
  %v2667 = vunpack.c.l.b16 %v2628
  %v2668 = vunpack.c.l.b16 %v2629
  %v2669 = vunpack.c.l.b16 %v2630
  %v2670 = vunpack.c.l.b16 %v2631
  %v2671 = vunpack.c.l.b16 %v2632
  %v2672 = vunpack.c.l.b16 %v2633
  %v2673 = vunpack.c.l.b16 %v2634
  %v2674 = vpack.c.b16 %v2659, %v2658
  %v2675 = vpack.c.b16 %v2661, %v2660
  %v2676 = vpack.c.b16 %v2663, %v2662
  %v2677 = vpack.c.b16 %v2665, %v2664
  %v2678 = vpack.c.b16 %v2667, %v2666
  %v2679 = vpack.c.b16 %v2669, %v2668
  %v2680 = vpack.c.b16 %v2671, %v2670
  %v2681 = vpack.c.b16 %v2673, %v2672
  %2690 = vmatprep.subr.bf16.mxu0 0
  %2691 = vmatpush1.bf16.msra.mxu0 %v2674
  %2692 = vmatprep.subr.bf16.mxu0 0
  %2693 = vmatpush1.bf16.msra.mxu0 %v2675
  %2694 = vmatprep.subr.bf16.mxu0 0
  %2695 = vmatpush1.bf16.msra.mxu0 %v2676
  %2696 = vmatprep.subr.bf16.mxu0 0
  %2697 = vmatpush1.bf16.msra.mxu0 %v2677
  %2698 = vmatprep.subr.bf16.mxu0 0
  %2699 = vmatpush1.bf16.msra.mxu0 %v2678
  %2700 = vmatprep.subr.bf16.mxu0 0
  %2701 = vmatpush1.bf16.msra.mxu0 %v2679
  %2702 = vmatprep.subr.bf16.mxu0 0
  %2703 = vmatpush1.bf16.msra.mxu0 %v2680
  %2704 = vmatprep.subr.bf16.mxu0 0
  %2705 = vmatpush1.bf16.msra.mxu0 %v2681
  %2706 = vmatprep.subr.bf16.mxu0 0
  %2707 = vmatpush1.bf16.msra.mxu0 0
  %2708 = vmatprep.subr.bf16.mxu0 0
  %2709 = vmatpush1.bf16.msra.mxu0 0
  %2710 = vmatprep.subr.bf16.mxu0 0
  %2711 = vmatpush1.bf16.msra.mxu0 0
  %2712 = vmatprep.subr.bf16.mxu0 0
  %2713 = vmatpush1.bf16.msra.mxu0 0
  %2714 = vmatprep.subr.bf16.mxu0 0
  %2715 = vmatpush1.bf16.msra.mxu0 0
  %2716 = vmatprep.subr.bf16.mxu0 0
  %2717 = vmatpush1.bf16.msra.mxu0 0
  %2718 = vmatprep.subr.bf16.mxu0 0
  %2719 = vmatpush1.bf16.msra.mxu0 0
  %2720 = vmatprep.subr.bf16.mxu0 0
  %2721 = vmatpush1.bf16.msra.mxu0 0
  %2722 = vmatprep.mubr.bf16.mxu0 0
  %2723 = vmatmul.mubr.bf16.gmra.mrb[0].mxu0 %v2615
  %v2724 = vpop.f32.mrb[0].mxu0
  %v2725 = vadd.f32 %v2640, %v2724
  %v2726 = vpop.f32.mrb[0].mxu0
  %v2727 = vpop.f32.mrb[0].mxu0
  %v2728 = vadd.f32 %v2640, %v2727
  %v2729 = vpop.f32.mrb[0].mxu0
  %2730 = vmatprep.mubr.bf16.mxu0 0
  %2731 = vmatmul.mubr.bf16.gmra.mrb[0].mxu0 %v2616
  %v2732 = vpop.f32.mrb[0].mxu0
  %v2733 = vadd.f32 %v2640, %v2732
  %v2734 = vpop.f32.mrb[0].mxu0
  %v2735 = vpop.f32.mrb[0].mxu0
  %v2736 = vadd.f32 %v2640, %v2735
  %v2737 = vpop.f32.mrb[0].mxu0
  %2738 = vmatprep.mubr.bf16.mxu0 0
  %2739 = vmatmul.mubr.bf16.gmra.mrb[0].mxu0 %v2617
  %v2740 = vpop.f32.mrb[0].mxu0
  %v2741 = vadd.f32 %v2640, %v2740
  %v2742 = vpop.f32.mrb[0].mxu0
  %v2743 = vpop.f32.mrb[0].mxu0
  %v2744 = vadd.f32 %v2640, %v2743
  %v2745 = vpop.f32.mrb[0].mxu0
  %2746 = vmatprep.mubr.bf16.mxu0 0
  %2747 = vmatmul.mubr.bf16.gmra.mrb[0].mxu0 %v2618
  %v2748 = vpop.f32.mrb[0].mxu0
  %v2749 = vadd.f32 %v2640, %v2748
  %v2750 = vpop.f32.mrb[0].mxu0
  %v2751 = vpop.f32.mrb[0].mxu0
  %v2752 = vadd.f32 %v2640, %v2751
  %v2753 = vpop.f32.mrb[0].mxu0
  %2754 = vdwg.mxu0
  %2755 = vst [vmem:[%s11] sm:$0xff] %v2725
  %2756 = vst [vmem:[%s11 + $0x8] sm:$0xff] %v2728
  %2757 = vst [vmem:[%s11 + $0x10] sm:$0xff] %v2733
  %2758 = vst [vmem:[%s11 + $0x18] sm:$0xff] %v2736
  %2759 = vst [vmem:[%s11 + $0x20] sm:$0xff] %v2741
  %2760 = vst [vmem:[%s11 + $0x28] sm:$0xff] %v2744
  %2761 = vst [vmem:[%s11 + $0x30] sm:$0xff] %v2749
  %2762 = vst [vmem:[%s11 + $0x38] sm:$0xff] %v2752
  // Predicated region
  $region46: #{lenet_batch_forward.1} parent=0 // pred_check
    _
  $region47: #{lenet_batch_forward.1} parent=0 // pred_check_branch
    %2764 = sbr.rel (0) target = $region49
  $region48: #{lenet_batch_forward.1} parent=0 // pred_region
    _
  $region49: #{lenet_batch_forward.1} parent=0 // pred_fallthru
    _
  // Predicated region
  $region50: #{lenet_batch_forward.1} parent=0 // pred_check
    _
  $region51: #{lenet_batch_forward.1} parent=0 // pred_check_branch
    %2766 = sbr.rel (0) target = $region53
  $region52: #{lenet_batch_forward.1} parent=0 // pred_region
    _
  $region53: #{lenet_batch_forward.1} parent=0 // pred_fallthru
    _

</llo_original>
